<compile_context>
chip_gen: v5e
topology: v5e:2x2
jax: 0.10.0
libtpu: 0.0.40
codegen_flags: <defaults>
</compile_context>

<pallas_src>
import functools

import jax
import jax.numpy as jnp
import numpy as np
from jax.experimental import pallas as pl
from jax.experimental.pallas import tpu as pltpu


def _round_up(x, m):
    return ((x + m - 1) // m) * m


def _pick_tile_b(B, max_tile_b):
    """Largest batch tile that (a) divides into >= 2 grid steps when B is large enough
    for both v7x TensorCores to get >= 128 rows each, and (b) keeps the sublane dim a
    multiple of 8 (or equal to B for tiny batches)."""
    if B <= 8:
        return B
    tile = min(_round_up(max_tile_b, 8), (B // 8) * 8)
    if B >= 256:
        tile = min(tile, _round_up(pl.cdiv(B, 2), 8))
    return tile


def _make_kernel(fuse_layer1):
    def kernel(obs_ref, act_ref, w1_ref, b1_ref, w2_ref, b2_ref, w3_ref, b3_ref,
               out_ref):
        if fuse_layer1:
            # In-kernel lane concat (f32 is the best-supported unaligned-concat case),
            # then one K=inp_dim MXU pass instead of two split-K passes.
            x = jnp.concatenate(
                [obs_ref[...].astype(jnp.float32), act_ref[...].astype(jnp.float32)],
                axis=-1).astype(w1_ref.dtype)
            h1 = jnp.dot(x, w1_ref[...], preferred_element_type=jnp.float32)
        else:
            # Fallback, mathematically identical: [obs|act] @ W1 = obs@W1[:o] + act@W1[o:]
            o = obs_ref.shape[-1]
            h1 = (jnp.dot(obs_ref[...], w1_ref[:o, :],
                          preferred_element_type=jnp.float32)
                  + jnp.dot(act_ref[...], w1_ref[o:, :],
                            preferred_element_type=jnp.float32))
        h1 = jnp.maximum(h1 + b1_ref[...], 0.0)

        h2 = jnp.dot(h1.astype(w2_ref.dtype), w2_ref[...],
                     preferred_element_type=jnp.float32)
        h2 = jnp.maximum(h2 + b2_ref[...], 0.0)

        z = jnp.dot(h2.astype(w3_ref.dtype), w3_ref[...],
                    preferred_element_type=jnp.float32)
        out_ref[...] = (z + b3_ref[...]).astype(out_ref.dtype)

    return kernel


@functools.partial(jax.jit, static_argnames=("fuse_layer1", "use_bf16", "max_tile_b"))
def _forward(obs, a_probs, params, fuse_layer1, use_bf16, max_tile_b):
    w1, b1, w2, b2, w3, b3 = params
    B, obs_size = obs.shape
    n_actions = a_probs.shape[1]
    inp_dim, hidden = w1.shape
    z_dim = w3.shape[1]
    assert inp_dim == obs_size + n_actions

    in_dtype = jnp.bfloat16 if use_bf16 else jnp.float32
    obs_k = obs.astype(in_dtype)
    act_k = a_probs.astype(in_dtype)
    # No-ops if params already went through prepare_params(use_bf16=...).
    w1_k = w1.astype(in_dtype)
    w2_k = w2.astype(in_dtype)
    w3_k = w3.astype(in_dtype)
    b1_k = b1.reshape(1, hidden).astype(jnp.float32)
    b2_k = b2.reshape(1, hidden).astype(jnp.float32)
    b3_k = b3.reshape(1, z_dim).astype(jnp.float32)

    tile_b = _pick_tile_b(B, max_tile_b)
    grid = (pl.cdiv(B, tile_b),)
    resident = lambda i: (0, 0)  # weights/biases resident across all batch tiles

    return pl.pallas_call(
        _make_kernel(fuse_layer1),
        out_shape=jax.ShapeDtypeStruct((B, z_dim), jnp.float32),
        grid_spec=pltpu.PrefetchScalarGridSpec(
            num_scalar_prefetch=0,
            grid=grid,
            in_specs=[
                pl.BlockSpec((tile_b, obs_size), lambda i: (i, 0)),   # obs tile
                pl.BlockSpec((tile_b, n_actions), lambda i: (i, 0)),  # a_probs tile
                pl.BlockSpec((inp_dim, hidden), resident),            # W1
                pl.BlockSpec((1, hidden), resident),                  # b1
                pl.BlockSpec((hidden, hidden), resident),             # W2
                pl.BlockSpec((1, hidden), resident),                  # b2
                pl.BlockSpec((hidden, z_dim), resident),              # W3
                pl.BlockSpec((1, z_dim), resident),                   # b3
            ],
            out_specs=pl.BlockSpec((tile_b, z_dim), lambda i: (i, 0)),
        ),
        compiler_params=pltpu.CompilerParams(
            dimension_semantics=("parallel",),
        ),
    )(obs_k, act_k, w1_k, b1_k, w2_k, b2_k, w3_k, b3_k)


_FUSED_LAYER1_OK = None  # probed once per process


def discriminator_forward(obs, a_probs, params, *, use_bf16=False, max_tile_b=2048):
    """obs: (B, obs_size), a_probs: (B, n_actions). Returns z: (B, z_dim) float32."""
    global _FUSED_LAYER1_OK
    if _FUSED_LAYER1_OK is None:
        try:
            out = _forward(obs, a_probs, params, True, use_bf16, max_tile_b)
            jax.block_until_ready(out)
            _FUSED_LAYER1_OK = True
            return out
        except Exception:
            # Mosaic build without unaligned lane-concat: use the split-K layer 1.
            _FUSED_LAYER1_OK = False
    return _forward(obs, a_probs, params, _FUSED_LAYER1_OK, use_bf16, max_tile_b)


def prepare_params(params, *, use_bf16=False):
    """One-time host-side prep (hoisted out of the per-call path): cast weights to the
    kernel compute dtype; biases stay fp32 (fp32 accumulate + fp32 epilogue)."""
    w1, b1, w2, b2, w3, b3 = params
    wdt = jnp.bfloat16 if use_bf16 else jnp.float32
    return (w1.astype(wdt), b1.astype(jnp.float32).reshape(1, -1),
            w2.astype(wdt), b2.astype(jnp.float32).reshape(1, -1),
            w3.astype(wdt), b3.astype(jnp.float32).reshape(1, -1))


def init_params(key, inp_dim, hidden, z_dim):
    """Deterministic synthetic init (uniform fan-in, like torch.nn.Linear default)."""
    ks = jax.random.split(key, 6)

    def linear(kw, kb, fan_in, fan_out):
        lim = 1.0 / np.sqrt(fan_in)
        w = jax.random.uniform(kw, (fan_in, fan_out), jnp.float32, -lim, lim)
        b = jax.random.uniform(kb, (1, fan_out), jnp.float32, -lim, lim)
        return w, b

    w1, b1 = linear(ks[0], ks[1], inp_dim, hidden)
    w2, b2 = linear(ks[2], ks[3], hidden, hidden)
    w3, b3 = linear(ks[4], ks[5], hidden, z_dim)
    return (w1, b1, w2, b2, w3, b3)


def reference_forward(obs, a_probs, params):
    w1, b1, w2, b2, w3, b3 = params
    x = jnp.concatenate([obs, a_probs], axis=-1)
    h1 = jnp.maximum(x @ w1 + b1, 0.0)
    h2 = jnp.maximum(h1 @ w2 + b2, 0.0)
    return h2 @ w3 + b3


if __name__ == "__main__":
    # Small config consistent with the module:
    #   obs_size = 16 (Box obs flattened), n_actions = 6 (Discrete(6) action probs),
    #   discrim_hidden_size = 32, z_dim = 4.  Batch = 19 on purpose (not a multiple of
    #   any tile) to exercise the clipped-final-block path.
    batch, obs_size, n_actions, hidden, z_dim = 19, 16, 6, 32, 4
    inp_dim = obs_size + n_actions

    key = jax.random.PRNGKey(0)
    k_obs, k_act, k_par = jax.random.split(key, 3)

    obs = jax.random.normal(k_obs, (batch, obs_size), jnp.float32)
    logits = jax.random.normal(k_act, (batch, n_actions), jnp.float32)
    a_probs = jax.nn.softmax(logits, axis=-1)

    params = init_params(k_par, inp_dim, hidden, z_dim)
    z_ref = reference_forward(obs, a_probs, params)

    # Exact-match path (fp32 operands).
    z = discriminator_forward(obs, a_probs, params)
    z = jax.block_until_ready(z)
    np.testing.assert_allclose(np.asarray(z), np.asarray(z_ref), rtol=1e-5, atol=1e-5)

    # Deployed-path smoke test (bf16 MXU operands, fp32 accumulate/epilogue).
    params_bf16 = prepare_params(params, use_bf16=True)
    z_bf16 = discriminator_forward(obs, a_probs, params_bf16, use_bf16=True)
    z_bf16 = jax.block_until_ready(z_bf16)
    np.testing.assert_allclose(np.asarray(z_bf16), np.asarray(z_ref),
                               rtol=5e-2, atol=5e-2)

    print("KERNEL_OK")
</pallas_src>

<mosaic_0001>
module attributes {stable_mosaic.version = 11 : i64} {
  func.func @kernel(%arg0: i32, %arg1: memref<16x16xf32, #tpu.memory_space<vmem>>, %arg2: memref<16x6xf32, #tpu.memory_space<vmem>>, %arg3: memref<22x32xf32, #tpu.memory_space<vmem>>, %arg4: memref<1x32xf32, #tpu.memory_space<vmem>>, %arg5: memref<32x32xf32, #tpu.memory_space<vmem>>, %arg6: memref<1x32xf32, #tpu.memory_space<vmem>>, %arg7: memref<32x4xf32, #tpu.memory_space<vmem>>, %arg8: memref<1x4xf32, #tpu.memory_space<vmem>>, %arg9: memref<16x4xf32, #tpu.memory_space<vmem>>) attributes {dimension_semantics = [#tpu.dimension_semantics<parallel>], iteration_bounds = array<i64: 2>, scalar_prefetch = 0 : i64, scratch_operands = 0 : i64, tpu.core_type = #tpu.core_type<tc>, window_params = [{transform_indices = @transform_0, window_bounds = array<i64: 16, 16>}, {transform_indices = @transform_1, window_bounds = array<i64: 16, 6>}, {pipeline_mode = #tpu.pipeline_mode<synchronous>, transform_indices = @transform_2, window_bounds = array<i64: 22, 32>}, {pipeline_mode = #tpu.pipeline_mode<synchronous>, transform_indices = @transform_3, window_bounds = array<i64: 1, 32>}, {pipeline_mode = #tpu.pipeline_mode<synchronous>, transform_indices = @transform_4, window_bounds = array<i64: 32, 32>}, {pipeline_mode = #tpu.pipeline_mode<synchronous>, transform_indices = @transform_5, window_bounds = array<i64: 1, 32>}, {pipeline_mode = #tpu.pipeline_mode<synchronous>, transform_indices = @transform_6, window_bounds = array<i64: 32, 4>}, {pipeline_mode = #tpu.pipeline_mode<synchronous>, transform_indices = @transform_7, window_bounds = array<i64: 1, 4>}, {transform_indices = @transform_8, window_bounds = array<i64: 16, 4>}]} {
    %c0 = arith.constant 0 : index
    %c0_0 = arith.constant 0 : index
    %0 = vector.load %arg1[%c0, %c0_0] : memref<16x16xf32, #tpu.memory_space<vmem>>, vector<16x16xf32>
    %c0_1 = arith.constant 0 : index
    %c0_2 = arith.constant 0 : index
    %1 = vector.load %arg2[%c0_1, %c0_2] : memref<16x6xf32, #tpu.memory_space<vmem>>, vector<16x6xf32>
    %2 = tpu.concatenate %0, %1 in 1 : vector<16x16xf32>, vector<16x6xf32> -> vector<16x22xf32>
    %c0_3 = arith.constant 0 : index
    %c0_4 = arith.constant 0 : index
    %3 = vector.load %arg3[%c0_3, %c0_4] : memref<22x32xf32, #tpu.memory_space<vmem>>, vector<22x32xf32>
    %cst = arith.constant dense<0.000000e+00> : vector<16x32xf32>
    %4 = tpu.matmul %2, %3, %cst {dimension_numbers = #tpu.dot_dimension_numbers<[1], [0], [0], [1], [0, 0, 1, 1], [], []>} : vector<16x22xf32>, vector<22x32xf32>, vector<16x32xf32> -> vector<16x32xf32>
    %c0_5 = arith.constant 0 : index
    %c0_6 = arith.constant 0 : index
    %5 = vector.load %arg4[%c0_5, %c0_6] : memref<1x32xf32, #tpu.memory_space<vmem>>, vector<1x32xf32>
    %6 = vector.broadcast %5 : vector<1x32xf32> to vector<16x32xf32>
    %7 = arith.addf %4, %6 : vector<16x32xf32>
    %cst_7 = arith.constant 0.000000e+00 : f32
    %8 = vector.broadcast %cst_7 : f32 to vector<16x32xf32>
    %9 = arith.maximumf %7, %8 : vector<16x32xf32>
    %c0_8 = arith.constant 0 : index
    %c0_9 = arith.constant 0 : index
    %10 = vector.load %arg5[%c0_8, %c0_9] : memref<32x32xf32, #tpu.memory_space<vmem>>, vector<32x32xf32>
    %cst_10 = arith.constant dense<0.000000e+00> : vector<16x32xf32>
    %11 = tpu.matmul %9, %10, %cst_10 {dimension_numbers = #tpu.dot_dimension_numbers<[1], [0], [0], [1], [0, 0, 1, 1], [], []>} : vector<16x32xf32>, vector<32x32xf32>, vector<16x32xf32> -> vector<16x32xf32>
    %c0_11 = arith.constant 0 : index
    %c0_12 = arith.constant 0 : index
    %12 = vector.load %arg6[%c0_11, %c0_12] : memref<1x32xf32, #tpu.memory_space<vmem>>, vector<1x32xf32>
    %13 = vector.broadcast %12 : vector<1x32xf32> to vector<16x32xf32>
    %14 = arith.addf %11, %13 : vector<16x32xf32>
    %cst_13 = arith.constant 0.000000e+00 : f32
    %15 = vector.broadcast %cst_13 : f32 to vector<16x32xf32>
    %16 = arith.maximumf %14, %15 : vector<16x32xf32>
    %c0_14 = arith.constant 0 : index
    %c0_15 = arith.constant 0 : index
    %17 = vector.load %arg7[%c0_14, %c0_15] : memref<32x4xf32, #tpu.memory_space<vmem>>, vector<32x4xf32>
    %cst_16 = arith.constant dense<0.000000e+00> : vector<16x4xf32>
    %18 = tpu.matmul %16, %17, %cst_16 {dimension_numbers = #tpu.dot_dimension_numbers<[1], [0], [0], [1], [0, 0, 1, 1], [], []>} : vector<16x32xf32>, vector<32x4xf32>, vector<16x4xf32> -> vector<16x4xf32>
    %c0_17 = arith.constant 0 : index
    %c0_18 = arith.constant 0 : index
    %19 = vector.load %arg8[%c0_17, %c0_18] : memref<1x4xf32, #tpu.memory_space<vmem>>, vector<1x4xf32>
    %20 = vector.broadcast %19 : vector<1x4xf32> to vector<16x4xf32>
    %21 = arith.addf %18, %20 : vector<16x4xf32>
    %c0_19 = arith.constant 0 : index
    %c0_20 = arith.constant 0 : index
    %22 = vector.load %arg9[%c0_19, %c0_20] : memref<16x4xf32, #tpu.memory_space<vmem>>, vector<16x4xf32>
    tpu.vector_store %arg9[%c0_19, %c0_20], %21 {strides = array<i32>} : memref<16x4xf32, #tpu.memory_space<vmem>>, vector<16x4xf32>,
    return
  }
  func.func @transform_0(%arg0: i32) -> (i32, i32) {
    %c0_i32 = arith.constant 0 : i32
    %c0_i32_0 = arith.constant 0 : i32
    return %arg0, %c0_i32 : i32, i32
  }
  func.func @transform_1(%arg0: i32) -> (i32, i32) {
    %c0_i32 = arith.constant 0 : i32
    %c0_i32_0 = arith.constant 0 : i32
    return %arg0, %c0_i32 : i32, i32
  }
  func.func @transform_2(%arg0: i32) -> (i32, i32) {
    %c0_i32 = arith.constant 0 : i32
    %c0_i32_0 = arith.constant 0 : i32
    %c0_i32_1 = arith.constant 0 : i32
    return %c0_i32, %c0_i32_0 : i32, i32
  }
  func.func @transform_3(%arg0: i32) -> (i32, i32) {
    %c0_i32 = arith.constant 0 : i32
    %c0_i32_0 = arith.constant 0 : i32
    %c0_i32_1 = arith.constant 0 : i32
    return %c0_i32, %c0_i32_0 : i32, i32
  }
  func.func @transform_4(%arg0: i32) -> (i32, i32) {
    %c0_i32 = arith.constant 0 : i32
    %c0_i32_0 = arith.constant 0 : i32
    %c0_i32_1 = arith.constant 0 : i32
    return %c0_i32, %c0_i32_0 : i32, i32
  }
  func.func @transform_5(%arg0: i32) -> (i32, i32) {
    %c0_i32 = arith.constant 0 : i32
    %c0_i32_0 = arith.constant 0 : i32
    %c0_i32_1 = arith.constant 0 : i32
    return %c0_i32, %c0_i32_0 : i32, i32
  }
  func.func @transform_6(%arg0: i32) -> (i32, i32) {
    %c0_i32 = arith.constant 0 : i32
    %c0_i32_0 = arith.constant 0 : i32
    %c0_i32_1 = arith.constant 0 : i32
    return %c0_i32, %c0_i32_0 : i32, i32
  }
  func.func @transform_7(%arg0: i32) -> (i32, i32) {
    %c0_i32 = arith.constant 0 : i32
    %c0_i32_0 = arith.constant 0 : i32
    %c0_i32_1 = arith.constant 0 : i32
    return %c0_i32, %c0_i32_0 : i32, i32
  }
  func.func @transform_8(%arg0: i32) -> (i32, i32) {
    %c0_i32 = arith.constant 0 : i32
    %c0_i32_0 = arith.constant 0 : i32
    return %arg0, %c0_i32 : i32, i32
  }
}

module attributes {stable_mosaic.version = 11 : i64} {
  func.func @kernel(%arg0: i32, %arg1: memref<16x16xf32, #tpu.memory_space<vmem>>, %arg2: memref<16x6xf32, #tpu.memory_space<vmem>>, %arg3: memref<22x32xf32, #tpu.memory_space<vmem>>, %arg4: memref<1x32xf32, #tpu.memory_space<vmem>>, %arg5: memref<32x32xf32, #tpu.memory_space<vmem>>, %arg6: memref<1x32xf32, #tpu.memory_space<vmem>>, %arg7: memref<32x4xf32, #tpu.memory_space<vmem>>, %arg8: memref<1x4xf32, #tpu.memory_space<vmem>>, %arg9: memref<16x4xf32, #tpu.memory_space<vmem>>) attributes {dimension_semantics = [#tpu.dimension_semantics<parallel>], iteration_bounds = array<i64: 2>, scalar_prefetch = 0 : i64, scratch_operands = 0 : i64, tpu.core_type = #tpu.core_type<tc>, window_params = [{transform_indices = @transform_0, window_bounds = array<i64: 16, 16>}, {transform_indices = @transform_1, window_bounds = array<i64: 16, 6>}, {pipeline_mode = #tpu.pipeline_mode<synchronous>, transform_indices = @transform_2, window_bounds = array<i64: 22, 32>}, {pipeline_mode = #tpu.pipeline_mode<synchronous>, transform_indices = @transform_3, window_bounds = array<i64: 1, 32>}, {pipeline_mode = #tpu.pipeline_mode<synchronous>, transform_indices = @transform_4, window_bounds = array<i64: 32, 32>}, {pipeline_mode = #tpu.pipeline_mode<synchronous>, transform_indices = @transform_5, window_bounds = array<i64: 1, 32>}, {pipeline_mode = #tpu.pipeline_mode<synchronous>, transform_indices = @transform_6, window_bounds = array<i64: 32, 4>}, {pipeline_mode = #tpu.pipeline_mode<synchronous>, transform_indices = @transform_7, window_bounds = array<i64: 1, 4>}, {transform_indices = @transform_8, window_bounds = array<i64: 16, 4>}]} {
    %c0 = arith.constant 0 : index
    %c0_0 = arith.constant 0 : index
    %0 = vector.load %arg1[%c0, %c0_0] : memref<16x16xf32, #tpu.memory_space<vmem>>, vector<16x16xf32>
    %c0_1 = arith.constant 0 : index
    %c0_2 = arith.constant 0 : index
    %1 = vector.load %arg3[%c0_1, %c0_2] : memref<22x32xf32, #tpu.memory_space<vmem>>, vector<16x32xf32>
    %cst = arith.constant dense<0.000000e+00> : vector<16x32xf32>
    %2 = tpu.matmul %0, %1, %cst {dimension_numbers = #tpu.dot_dimension_numbers<[1], [0], [0], [1], [0, 0, 1, 1], [], []>} : vector<16x16xf32>, vector<16x32xf32>, vector<16x32xf32> -> vector<16x32xf32>
    %c0_3 = arith.constant 0 : index
    %c0_4 = arith.constant 0 : index
    %3 = vector.load %arg2[%c0_3, %c0_4] : memref<16x6xf32, #tpu.memory_space<vmem>>, vector<16x6xf32>
    %c16 = arith.constant 16 : index
    %c0_5 = arith.constant 0 : index
    %4 = vector.load %arg3[%c16, %c0_5] : memref<22x32xf32, #tpu.memory_space<vmem>>, vector<6x32xf32>
    %cst_6 = arith.constant dense<0.000000e+00> : vector<16x32xf32>
    %5 = tpu.matmul %3, %4, %cst_6 {dimension_numbers = #tpu.dot_dimension_numbers<[1], [0], [0], [1], [0, 0, 1, 1], [], []>} : vector<16x6xf32>, vector<6x32xf32>, vector<16x32xf32> -> vector<16x32xf32>
    %6 = arith.addf %2, %5 : vector<16x32xf32>
    %c0_7 = arith.constant 0 : index
    %c0_8 = arith.constant 0 : index
    %7 = vector.load %arg4[%c0_7, %c0_8] : memref<1x32xf32, #tpu.memory_space<vmem>>, vector<1x32xf32>
    %8 = vector.broadcast %7 : vector<1x32xf32> to vector<16x32xf32>
    %9 = arith.addf %6, %8 : vector<16x32xf32>
    %cst_9 = arith.constant 0.000000e+00 : f32
    %10 = vector.broadcast %cst_9 : f32 to vector<16x32xf32>
    %11 = arith.maximumf %9, %10 : vector<16x32xf32>
    %c0_10 = arith.constant 0 : index
    %c0_11 = arith.constant 0 : index
    %12 = vector.load %arg5[%c0_10, %c0_11] : memref<32x32xf32, #tpu.memory_space<vmem>>, vector<32x32xf32>
    %cst_12 = arith.constant dense<0.000000e+00> : vector<16x32xf32>
    %13 = tpu.matmul %11, %12, %cst_12 {dimension_numbers = #tpu.dot_dimension_numbers<[1], [0], [0], [1], [0, 0, 1, 1], [], []>} : vector<16x32xf32>, vector<32x32xf32>, vector<16x32xf32> -> vector<16x32xf32>
    %c0_13 = arith.constant 0 : index
    %c0_14 = arith.constant 0 : index
    %14 = vector.load %arg6[%c0_13, %c0_14] : memref<1x32xf32, #tpu.memory_space<vmem>>, vector<1x32xf32>
    %15 = vector.broadcast %14 : vector<1x32xf32> to vector<16x32xf32>
    %16 = arith.addf %13, %15 : vector<16x32xf32>
    %cst_15 = arith.constant 0.000000e+00 : f32
    %17 = vector.broadcast %cst_15 : f32 to vector<16x32xf32>
    %18 = arith.maximumf %16, %17 : vector<16x32xf32>
    %c0_16 = arith.constant 0 : index
    %c0_17 = arith.constant 0 : index
    %19 = vector.load %arg7[%c0_16, %c0_17] : memref<32x4xf32, #tpu.memory_space<vmem>>, vector<32x4xf32>
    %cst_18 = arith.constant dense<0.000000e+00> : vector<16x4xf32>
    %20 = tpu.matmul %18, %19, %cst_18 {dimension_numbers = #tpu.dot_dimension_numbers<[1], [0], [0], [1], [0, 0, 1, 1], [], []>} : vector<16x32xf32>, vector<32x4xf32>, vector<16x4xf32> -> vector<16x4xf32>
    %c0_19 = arith.constant 0 : index
    %c0_20 = arith.constant 0 : index
    %21 = vector.load %arg8[%c0_19, %c0_20] : memref<1x4xf32, #tpu.memory_space<vmem>>, vector<1x4xf32>
    %22 = vector.broadcast %21 : vector<1x4xf32> to vector<16x4xf32>
    %23 = arith.addf %20, %22 : vector<16x4xf32>
    %c0_21 = arith.constant 0 : index
    %c0_22 = arith.constant 0 : index
    %24 = vector.load %arg9[%c0_21, %c0_22] : memref<16x4xf32, #tpu.memory_space<vmem>>, vector<16x4xf32>
    tpu.vector_store %arg9[%c0_21, %c0_22], %23 {strides = array<i32>} : memref<16x4xf32, #tpu.memory_space<vmem>>, vector<16x4xf32>,
    return
  }
  func.func @transform_0(%arg0: i32) -> (i32, i32) {
    %c0_i32 = arith.constant 0 : i32
    %c0_i32_0 = arith.constant 0 : i32
    return %arg0, %c0_i32 : i32, i32
  }
  func.func @transform_1(%arg0: i32) -> (i32, i32) {
    %c0_i32 = arith.constant 0 : i32
    %c0_i32_0 = arith.constant 0 : i32
    return %arg0, %c0_i32 : i32, i32
  }
  func.func @transform_2(%arg0: i32) -> (i32, i32) {
    %c0_i32 = arith.constant 0 : i32
    %c0_i32_0 = arith.constant 0 : i32
    %c0_i32_1 = arith.constant 0 : i32
    return %c0_i32, %c0_i32_0 : i32, i32
  }
  func.func @transform_3(%arg0: i32) -> (i32, i32) {
    %c0_i32 = arith.constant 0 : i32
    %c0_i32_0 = arith.constant 0 : i32
    %c0_i32_1 = arith.constant 0 : i32
    return %c0_i32, %c0_i32_0 : i32, i32
  }
  func.func @transform_4(%arg0: i32) -> (i32, i32) {
    %c0_i32 = arith.constant 0 : i32
    %c0_i32_0 = arith.constant 0 : i32
    %c0_i32_1 = arith.constant 0 : i32
    return %c0_i32, %c0_i32_0 : i32, i32
  }
  func.func @transform_5(%arg0: i32) -> (i32, i32) {
    %c0_i32 = arith.constant 0 : i32
    %c0_i32_0 = arith.constant 0 : i32
    %c0_i32_1 = arith.constant 0 : i32
    return %c0_i32, %c0_i32_0 : i32, i32
  }
  func.func @transform_6(%arg0: i32) -> (i32, i32) {
    %c0_i32 = arith.constant 0 : i32
    %c0_i32_0 = arith.constant 0 : i32
    %c0_i32_1 = arith.constant 0 : i32
    return %c0_i32, %c0_i32_0 : i32, i32
  }
  func.func @transform_7(%arg0: i32) -> (i32, i32) {
    %c0_i32 = arith.constant 0 : i32
    %c0_i32_0 = arith.constant 0 : i32
    %c0_i32_1 = arith.constant 0 : i32
    return %c0_i32, %c0_i32_0 : i32, i32
  }
  func.func @transform_8(%arg0: i32) -> (i32, i32) {
    %c0_i32 = arith.constant 0 : i32
    %c0_i32_0 = arith.constant 0 : i32
    return %arg0, %c0_i32 : i32, i32
  }
}

</mosaic_0001>

<llo_original>
// kernel: _forward.1
$region0: #{_forward.1}
  #allocation0 [shape = 'u32[]', space=smem, size = 0x4, offset = 0x4, fixed_abs, tag = 'smem constant byte address 0x4 - core index']
  #allocation1 [shape = 'u32[72,128]{1,0:T(1,128)}', space=vmem, size = 0x9000, scoped, tag = 'internal scratch']
  %s0 = inlined_call_operand.vmem [shape: f32[19,16], index: 0, kind: input, shape index: {}]
  %s1 = inlined_call_operand.vmem [shape: f32[19,6], index: 1, kind: input, shape index: {}]
  %s2 = inlined_call_operand.vmem [shape: f32[22,32], index: 2, kind: input, shape index: {}]
  %s3 = inlined_call_operand.vmem [shape: f32[1,32], index: 3, kind: input, shape index: {}]
  %s4 = inlined_call_operand.vmem [shape: f32[32,32], index: 4, kind: input, shape index: {}]
  %s5 = inlined_call_operand.vmem [shape: f32[1,32], index: 5, kind: input, shape index: {}]
  %s6 = inlined_call_operand.vmem [shape: f32[32,4], index: 6, kind: input, shape index: {}]
  %s7 = inlined_call_operand.vmem [shape: f32[1,4], index: 7, kind: input, shape index: {}]
  %s8 = inlined_call_operand.vmem [shape: f32[19,4], index: 8, kind: output, shape index: {}]
  %s9 = sld [smem:[#allocation0]]
  $region113: #{_forward.1} parent=0
    _
  %s11 = ssub.s32 1, %s9
  %s12 = scalar_select 0, %s11, %s9
  $region1: #{_forward.1} parent=0
    #allocation2 [shape = 'u8[16384]{0}', space=vmem, size = 0x4000, scoped, tag = 'output window, operand 0']
    loop: start=0, step=1, limit=4
    $region2: #{_forward.1} parent=1 // loop_pre_header
      _
    $region3: #{_forward.1} parent=1 // loop_header
      %s14 = sphi 0, %s18
      %p15 = scmp.ge.s32.totalorder %s14, 4
      %s24 = sphi 0, %s26
      %s27 = sphi 0, %s24
      %s28 = sphi 0, %s27
      %s44 = sphi 0, %s28
      %s50 = sphi 0, %s52
      %s53 = sphi 0, %s50
      %s54 = sphi 0, %s53
      %s70 = sphi 0, %s54
      %s74 = sphi 0, %s74
      %s76 = sphi 0, %s74
      %s77 = sphi 0, %s76
      %s91 = sphi 0, %s77
      %s95 = sphi 0, %s95
      %s97 = sphi 0, %s95
      %s98 = sphi 0, %s97
      %s112 = sphi 0, %s98
      %s116 = sphi 0, %s116
      %s118 = sphi 0, %s116
      %s119 = sphi 0, %s118
      %s133 = sphi 0, %s119
      %s137 = sphi 0, %s137
      %s139 = sphi 0, %s137
      %s140 = sphi 0, %s139
      %s154 = sphi 0, %s140
      %s158 = sphi 0, %s158
      %s160 = sphi 0, %s158
      %s161 = sphi 0, %s160
      %s175 = sphi 0, %s161
      %s179 = sphi 0, %s179
      %s181 = sphi 0, %s179
      %s182 = sphi 0, %s181
      %s196 = sphi 0, %s182
      %s202 = sphi 0, %s204
      %s205 = sphi 0, %s202
      %s206 = sphi 0, %s205
      %s222 = sphi 0, %s206
    $region4: #{_forward.1} parent=1 // loop_header_branch
      %17 = sbr.rel (%p15) target = $region8
    $region5: #{_forward.1} parent=1 // loop_body
      %s19 = ssub.s32 %s14, 1
      %s20 = ssub.s32 %s14, 2
      %s21 = sadd.s32 %s14, 1
      %s22 = ssub.s32 %s14, %s21
      %p23 = scmp.eq.s32.totalorder %s22, 0
      %s25 = sadd.s32 %s24, 1
      %s26 = scalar_select %p23, %s24, %s25
      %p29 = pneg %p23
      %p30 = scmp.eq.s32.totalorder %s14, 1
      %p31 = por %p29, %p30
      %p32 = scmp.ne.s32.totalorder %s24, %s27
      %p33 = scmp.eq.s32.totalorder %s14, 0
      %p34 = por %p32, %p33
      %p35 = scmp.ne.s32.totalorder %s24, %s27
      %p36 = scmp.eq.s32.totalorder %s19, 1
      %p37 = por %p35, %p36
      %p38 = scmp.ne.s32.totalorder %s27, %s28
      %p39 = scmp.eq.s32.totalorder %s19, 0
      %p40 = por %p38, %p39
      %p41 = scmp.ne.s32.totalorder %s27, %s28
      %p42 = scmp.eq.s32.totalorder %s20, 1
      %p43 = por %p41, %p42
      %p45 = scmp.ne.s32.totalorder %s28, %s44
      %p46 = scmp.eq.s32.totalorder %s20, 0
      %p47 = por %p45, %p46
      %s48 = ssub.s32 %s14, %s21
      %p49 = scmp.eq.s32.totalorder %s48, 0
      %s51 = sadd.s32 %s50, 1
      %s52 = scalar_select %p49, %s50, %s51
      %p55 = pneg %p49
      %p56 = scmp.eq.s32.totalorder %s14, 1
      %p57 = por %p55, %p56
      %p58 = scmp.ne.s32.totalorder %s50, %s53
      %p59 = scmp.eq.s32.totalorder %s14, 0
      %p60 = por %p58, %p59
      %p61 = scmp.ne.s32.totalorder %s50, %s53
      %p62 = scmp.eq.s32.totalorder %s19, 1
      %p63 = por %p61, %p62
      %p64 = scmp.ne.s32.totalorder %s53, %s54
      %p65 = scmp.eq.s32.totalorder %s19, 0
      %p66 = por %p64, %p65
      %p67 = scmp.ne.s32.totalorder %s53, %s54
      %p68 = scmp.eq.s32.totalorder %s20, 1
      %p69 = por %p67, %p68
      %p71 = scmp.ne.s32.totalorder %s54, %s70
      %p72 = scmp.eq.s32.totalorder %s20, 0
      %p73 = por %p71, %p72
      %s75 = sadd.s32 %s74, 1
      %p78 = scmp.eq.s32.totalorder %s14, 1
      %p79 = scmp.ne.s32.totalorder %s74, %s76
      %p80 = scmp.eq.s32.totalorder %s14, 0
      %p81 = por %p79, %p80
      %p82 = scmp.ne.s32.totalorder %s74, %s76
      %p83 = scmp.eq.s32.totalorder %s19, 1
      %p84 = por %p82, %p83
      %p85 = scmp.ne.s32.totalorder %s76, %s77
      %p86 = scmp.eq.s32.totalorder %s19, 0
      %p87 = por %p85, %p86
      %p88 = scmp.ne.s32.totalorder %s76, %s77
      %p89 = scmp.eq.s32.totalorder %s20, 1
      %p90 = por %p88, %p89
      %p92 = scmp.ne.s32.totalorder %s77, %s91
      %p93 = scmp.eq.s32.totalorder %s20, 0
      %p94 = por %p92, %p93
      %s96 = sadd.s32 %s95, 1
      %p99 = scmp.eq.s32.totalorder %s14, 1
      %p100 = scmp.ne.s32.totalorder %s95, %s97
      %p101 = scmp.eq.s32.totalorder %s14, 0
      %p102 = por %p100, %p101
      %p103 = scmp.ne.s32.totalorder %s95, %s97
      %p104 = scmp.eq.s32.totalorder %s19, 1
      %p105 = por %p103, %p104
      %p106 = scmp.ne.s32.totalorder %s97, %s98
      %p107 = scmp.eq.s32.totalorder %s19, 0
      %p108 = por %p106, %p107
      %p109 = scmp.ne.s32.totalorder %s97, %s98
      %p110 = scmp.eq.s32.totalorder %s20, 1
      %p111 = por %p109, %p110
      %p113 = scmp.ne.s32.totalorder %s98, %s112
      %p114 = scmp.eq.s32.totalorder %s20, 0
      %p115 = por %p113, %p114
      %s117 = sadd.s32 %s116, 1
      %p120 = scmp.eq.s32.totalorder %s14, 1
      %p121 = scmp.ne.s32.totalorder %s116, %s118
      %p122 = scmp.eq.s32.totalorder %s14, 0
      %p123 = por %p121, %p122
      %p124 = scmp.ne.s32.totalorder %s116, %s118
      %p125 = scmp.eq.s32.totalorder %s19, 1
      %p126 = por %p124, %p125
      %p127 = scmp.ne.s32.totalorder %s118, %s119
      %p128 = scmp.eq.s32.totalorder %s19, 0
      %p129 = por %p127, %p128
      %p130 = scmp.ne.s32.totalorder %s118, %s119
      %p131 = scmp.eq.s32.totalorder %s20, 1
      %p132 = por %p130, %p131
      %p134 = scmp.ne.s32.totalorder %s119, %s133
      %p135 = scmp.eq.s32.totalorder %s20, 0
      %p136 = por %p134, %p135
      %s138 = sadd.s32 %s137, 1
      %p141 = scmp.eq.s32.totalorder %s14, 1
      %p142 = scmp.ne.s32.totalorder %s137, %s139
      %p143 = scmp.eq.s32.totalorder %s14, 0
      %p144 = por %p142, %p143
      %p145 = scmp.ne.s32.totalorder %s137, %s139
      %p146 = scmp.eq.s32.totalorder %s19, 1
      %p147 = por %p145, %p146
      %p148 = scmp.ne.s32.totalorder %s139, %s140
      %p149 = scmp.eq.s32.totalorder %s19, 0
      %p150 = por %p148, %p149
      %p151 = scmp.ne.s32.totalorder %s139, %s140
      %p152 = scmp.eq.s32.totalorder %s20, 1
      %p153 = por %p151, %p152
      %p155 = scmp.ne.s32.totalorder %s140, %s154
      %p156 = scmp.eq.s32.totalorder %s20, 0
      %p157 = por %p155, %p156
      %s159 = sadd.s32 %s158, 1
      %p162 = scmp.eq.s32.totalorder %s14, 1
      %p163 = scmp.ne.s32.totalorder %s158, %s160
      %p164 = scmp.eq.s32.totalorder %s14, 0
      %p165 = por %p163, %p164
      %p166 = scmp.ne.s32.totalorder %s158, %s160
      %p167 = scmp.eq.s32.totalorder %s19, 1
      %p168 = por %p166, %p167
      %p169 = scmp.ne.s32.totalorder %s160, %s161
      %p170 = scmp.eq.s32.totalorder %s19, 0
      %p171 = por %p169, %p170
      %p172 = scmp.ne.s32.totalorder %s160, %s161
      %p173 = scmp.eq.s32.totalorder %s20, 1
      %p174 = por %p172, %p173
      %p176 = scmp.ne.s32.totalorder %s161, %s175
      %p177 = scmp.eq.s32.totalorder %s20, 0
      %p178 = por %p176, %p177
      %s180 = sadd.s32 %s179, 1
      %p183 = scmp.eq.s32.totalorder %s14, 1
      %p184 = scmp.ne.s32.totalorder %s179, %s181
      %p185 = scmp.eq.s32.totalorder %s14, 0
      %p186 = por %p184, %p185
      %p187 = scmp.ne.s32.totalorder %s179, %s181
      %p188 = scmp.eq.s32.totalorder %s19, 1
      %p189 = por %p187, %p188
      %p190 = scmp.ne.s32.totalorder %s181, %s182
      %p191 = scmp.eq.s32.totalorder %s19, 0
      %p192 = por %p190, %p191
      %p193 = scmp.ne.s32.totalorder %s181, %s182
      %p194 = scmp.eq.s32.totalorder %s20, 1
      %p195 = por %p193, %p194
      %p197 = scmp.ne.s32.totalorder %s182, %s196
      %p198 = scmp.eq.s32.totalorder %s20, 0
      %p199 = por %p197, %p198
      %s200 = ssub.s32 %s14, %s21
      %p201 = scmp.eq.s32.totalorder %s200, 0
      %s203 = sadd.s32 %s202, 1
      %s204 = scalar_select %p201, %s202, %s203
      %p207 = pneg %p201
      %p208 = scmp.eq.s32.totalorder %s14, 1
      %p209 = por %p207, %p208
      %p210 = scmp.ne.s32.totalorder %s202, %s205
      %p211 = scmp.eq.s32.totalorder %s14, 0
      %p212 = por %p210, %p211
      %p213 = scmp.ne.s32.totalorder %s202, %s205
      %p214 = scmp.eq.s32.totalorder %s19, 1
      %p215 = por %p213, %p214
      %p216 = scmp.ne.s32.totalorder %s205, %s206
      %p217 = scmp.eq.s32.totalorder %s19, 0
      %p218 = por %p216, %p217
      %p219 = scmp.ne.s32.totalorder %s205, %s206
      %p220 = scmp.eq.s32.totalorder %s20, 1
      %p221 = por %p219, %p220
      %p223 = scmp.ne.s32.totalorder %s206, %s222
      %p224 = scmp.eq.s32.totalorder %s20, 0
      %p225 = por %p223, %p224
      %p226 = scmp.le.s32.totalorder 1, %s14
      %p227 = scmp.lt.s32.totalorder %s14, 3
      %p228 = pnand %p226, %p227
      %p229 = pneg %p228
      // Predicated region
      $region9: #{_forward.1} parent=5 // pred_check
        _
      $region10: #{_forward.1} parent=5 // pred_check_branch
        %231 = sbr.rel (%p228) target = $region12
      $region11: #{_forward.1} parent=5 // pred_region
        %s232 = ssub.s32 %s14, 1
        // Predicated region
        $region13: #{_forward.1} parent=11 // pred_check
          %p233 = pneg %p87
        $region14: #{_forward.1} parent=11 // pred_check_branch
          %235 = sbr.rel (%p233) target = $region16
        $region15: #{_forward.1} parent=11 // pred_region
          _
        $region16: #{_forward.1} parent=11 // pred_fallthru
          _
        // Predicated region
        $region17: #{_forward.1} parent=11 // pred_check
          %p236 = pneg %p108
        $region18: #{_forward.1} parent=11 // pred_check_branch
          %238 = sbr.rel (%p236) target = $region20
        $region19: #{_forward.1} parent=11 // pred_region
          _
        $region20: #{_forward.1} parent=11 // pred_fallthru
          _
        // Predicated region
        $region21: #{_forward.1} parent=11 // pred_check
          %p239 = pneg %p129
        $region22: #{_forward.1} parent=11 // pred_check_branch
          %241 = sbr.rel (%p239) target = $region24
        $region23: #{_forward.1} parent=11 // pred_region
          _
        $region24: #{_forward.1} parent=11 // pred_fallthru
          _
        // Predicated region
        $region25: #{_forward.1} parent=11 // pred_check
          %p242 = pneg %p150
        $region26: #{_forward.1} parent=11 // pred_check_branch
          %244 = sbr.rel (%p242) target = $region28
        $region27: #{_forward.1} parent=11 // pred_region
          _
        $region28: #{_forward.1} parent=11 // pred_fallthru
          _
        // Predicated region
        $region29: #{_forward.1} parent=11 // pred_check
          %p245 = pneg %p171
        $region30: #{_forward.1} parent=11 // pred_check_branch
          %247 = sbr.rel (%p245) target = $region32
        $region31: #{_forward.1} parent=11 // pred_region
          _
        $region32: #{_forward.1} parent=11 // pred_fallthru
          _
        // Predicated region
        $region33: #{_forward.1} parent=11 // pred_check
          %p248 = pneg %p192
        $region34: #{_forward.1} parent=11 // pred_check_branch
          %250 = sbr.rel (%p248) target = $region36
        $region35: #{_forward.1} parent=11 // pred_region
          _
        $region36: #{_forward.1} parent=11 // pred_fallthru
          _
      $region12: #{_forward.1} parent=5 // pred_fallthru
        _
      %p251 = scmp.lt.s32.totalorder %s14, 2
      // Predicated region
      $region37: #{_forward.1} parent=5 // pred_check
        %p252 = pneg %p251
      $region38: #{_forward.1} parent=5 // pred_check_branch
        %254 = sbr.rel (%p252) target = $region40
      $region39: #{_forward.1} parent=5 // pred_region
        // Predicated region
        $region41: #{_forward.1} parent=39 // pred_check
          %p255 = pneg %p34
        $region42: #{_forward.1} parent=39 // pred_check_branch
          %257 = sbr.rel (%p255) target = $region44
        $region43: #{_forward.1} parent=39 // pred_region
          %s258 = smul.u32 2, %s14
          %s259 = ssub.s32 3, %s258
          %p260 = scmp.lt.s32.totalorder %s259, 2
          %s261 = scalar_select %p260, %s259, 2
          %s262 = smul.u32 8, %s261
          %p263 = scmp.lt.s32.totalorder %s258, 2
          %s264 = scalar_select %p263, %s258, 2
          %s265 = smul.addr %s264, 8
          %s266 = scalar_lea.vmem %s0, %s265
          %s267 = smul.u32 2, %s14
          %s268 = ssub.s32 3, %s267
          %p269 = scmp.lt.s32.totalorder %s268, 2
          %s270 = scalar_select %p269, %s268, 2
          %s271 = smul.u32 8, %s270
        $region44: #{_forward.1} parent=39 // pred_fallthru
          _
        // Predicated region
        $region45: #{_forward.1} parent=39 // pred_check
          %p272 = pneg %p60
        $region46: #{_forward.1} parent=39 // pred_check_branch
          %274 = sbr.rel (%p272) target = $region48
        $region47: #{_forward.1} parent=39 // pred_region
          %s275 = smul.u32 2, %s14
          %s276 = ssub.s32 3, %s275
          %p277 = scmp.lt.s32.totalorder %s276, 2
          %s278 = scalar_select %p277, %s276, 2
          %s279 = smul.u32 8, %s278
          %p280 = scmp.lt.s32.totalorder %s275, 2
          %s281 = scalar_select %p280, %s275, 2
          %s282 = smul.addr %s281, 8
          %s283 = scalar_lea.vmem %s1, %s282
          %s284 = smul.u32 2, %s14
          %s285 = ssub.s32 3, %s284
          %p286 = scmp.lt.s32.totalorder %s285, 2
          %s287 = scalar_select %p286, %s285, 2
          %s288 = smul.u32 8, %s287
        $region48: #{_forward.1} parent=39 // pred_fallthru
          _
      $region40: #{_forward.1} parent=5 // pred_fallthru
        _
      %p289 = scmp.le.s32.totalorder 1, %s14
      %p290 = scmp.lt.s32.totalorder %s14, 3
      %p291 = pnand %p289, %p290
      %p292 = pneg %p291
      // Predicated region
      $region49: #{_forward.1} parent=5 // pred_check
        _
      $region50: #{_forward.1} parent=5 // pred_check_branch
        %294 = sbr.rel (%p291) target = $region52
      $region51: #{_forward.1} parent=5 // pred_region
        %s295 = ssub.s32 %s14, 1
        %s296 = smul.u32 2, %s19
        %s297 = ssub.s32 3, %s296
        %p298 = scmp.lt.s32.totalorder %s297, 2
        %s299 = scalar_select %p298, %s297, 2
        %s300 = smul.u32 8, %s299
        %p301 = scmp.lt.s32.totalorder %s296, 2
        %s302 = scalar_select %p301, %s296, 2
        %s303 = smul.addr %s302, 8
        %s304 = scalar_lea.vmem %s0, %s303
        %p305 = pneg %p40
        %p306 = pneg %p37
        %s307 = smul.u32 2, %s19
        %s308 = ssub.s32 3, %s307
        %p309 = scmp.lt.s32.totalorder %s308, 2
        %s310 = scalar_select %p309, %s308, 2
        %s311 = smul.u32 8, %s310
        %p312 = scmp.lt.s32.totalorder %s307, 2
        %s313 = scalar_select %p312, %s307, 2
        %s314 = smul.addr %s313, 8
        %s315 = scalar_lea.vmem %s1, %s314
        %p316 = pneg %p66
        %p317 = pneg %p63
        %p318 = pneg %p87
        %p319 = pneg %p84
        %p320 = pneg %p108
        %p321 = pneg %p105
        %p322 = pneg %p129
        %p323 = pneg %p126
        %p324 = pneg %p150
        %p325 = pneg %p147
        %p326 = pneg %p171
        %p327 = pneg %p168
        %p328 = pneg %p192
        %p329 = pneg %p189
        %p330 = pneg %p218
        %p331 = pneg %p215
        %s332 = sand.u32 %s205, 1
        %s333 = sand.u32 %s205, 1
        %s334 = smul.addr %s333, 16
        %s335 = scalar_lea.vmem [#allocation2], %s334
        %s336 = smul.u32 2, %s19
        %s337 = ssub.s32 3, %s336
        %p338 = scmp.lt.s32.totalorder %s337, 2
        %s339 = scalar_select %p338, %s337, 2
        %s340 = smul.u32 8, %s339
        %p341 = scmp.lt.s32.totalorder %s336, 2
        %s342 = scalar_select %p341, %s336, 2
        %s343 = smul.addr %s342, 8
        %s344 = scalar_lea.vmem %s0, %s343
        %s345 = smul.u32 2, %s19
        %s346 = ssub.s32 3, %s345
        %p347 = scmp.lt.s32.totalorder %s346, 2
        %s348 = scalar_select %p347, %s346, 2
        %s349 = smul.u32 8, %s348
        %s350 = smul.u32 2, %s19
        %s351 = ssub.s32 3, %s350
        %p352 = scmp.lt.s32.totalorder %s351, 2
        %s353 = scalar_select %p352, %s351, 2
        %s354 = smul.u32 8, %s353
        %p355 = scmp.lt.s32.totalorder %s350, 2
        %s356 = scalar_select %p355, %s350, 2
        %s357 = smul.addr %s356, 8
        %s358 = scalar_lea.vmem %s1, %s357
        %s359 = smul.u32 2, %s19
        %s360 = ssub.s32 3, %s359
        %p361 = scmp.lt.s32.totalorder %s360, 2
        %s362 = scalar_select %p361, %s360, 2
        %s363 = smul.u32 8, %s362
        %s364 = smul.u32 2, %s19
        %s365 = ssub.s32 3, %s364
        %p366 = scmp.lt.s32.totalorder %s365, 2
        %s367 = scalar_select %p366, %s365, 2
        %s368 = smul.u32 8, %s367
        %v369 = vld [vmem:[%s344] sm:$0xff]
        %v370 = vld [vmem:[%s344 + $0x8] sm:$0xff]
        %v371 = vld [vmem:[%s358] sm:$0xff]
        %v372 = vld [vmem:[%s358 + $0x8] sm:$0xff]
        %375 = vrot.lane.b32.xlu0 %v371, 16
        %v376 = vpop.permute.xlu0 %375
        %377 = vrot.lane.b32.xlu0 %v372, 16
        %v378 = vpop.permute.xlu0 %377
        %vm381 = vcmask 130048
        %v382 = vsel %vm381, %v369, %v376
        %v383 = vsel %vm381, %v370, %v378
        %v384 = vld [vmem:[%s2] sm:$0xff]
        %v385 = vld [vmem:[%s2 + $0x8] sm:$0xff]
        %v386 = vld [vmem:[%s2 + $0x10] sm:$0x3f]
        %v387 = vld [vmem:[%s3] sm:$0x1]
        %v389 = vperm.slane %v387, 0
        %vm391 = vcmask 179200
        %v393 = vsel %vm391, %v382, 0
        %v396 = vsel %vm391, %v383, 0
        %vm398 = vcmask 1045504
        %v400 = vsel %vm398, %v386, 0
        %402 = vmatpush.msra.mxu0 0.0
        %403 = vmatpush.msra.mxu0 0.0
        %404 = vmatpush.msra.mxu0 0.0
        %405 = vmatpush.msra.mxu0 0.0
        %406 = vmatpush.msra.mxu0 0.0
        %407 = vmatpush.msra.mxu0 0.0
        %408 = vmatpush.msra.mxu0 0.0
        %409 = vmatpush.msra.mxu0 0.0
        %410 = vmatpush.msra.mxu0 0.0
        %411 = vmatpush.msra.mxu0 0.0
        %412 = vmatpush.msra.mxu0 0.0
        %413 = vmatpush.msra.mxu0 0.0
        %414 = vmatpush.msra.mxu0 0.0
        %415 = vmatpush.msra.mxu0 %v400
        %416 = vmatpush.msra.mxu0 %v385
        %417 = vmatpush.msra.mxu0 %v384
        %418 = vmatmul.f32.gmra.mxu0 %v393
        %v419 = vpop.f32.mrf.mxu0
        %v420 = vadd.f32 %v389, %v419
        %421 = vmatmul.f32.gmra.mxu0 %v396
        %v422 = vpop.f32.mrf.mxu0
        %v423 = vadd.f32 %v389, %v422
        %424 = vdwg.mxu0
        %v425 = vmax.f32 %v420, 0.0
        %v426 = vmax.f32 %v423, 0.0
        %v427 = vld [vmem:[%s4] sm:$0xff]
        %v428 = vld [vmem:[%s4 + $0x8] sm:$0xff]
        %v429 = vld [vmem:[%s4 + $0x10] sm:$0xff]
        %v430 = vld [vmem:[%s4 + $0x18] sm:$0xff]
        %v431 = vld [vmem:[%s5] sm:$0x1]
        %v433 = vperm.slane %v431, 0
        %vm435 = vcmask 261120
        %v437 = vsel %vm435, %v425, 0
        %v440 = vsel %vm435, %v426, 0
        %442 = vmatpush.msra.mxu0 0.0
        %443 = vmatpush.msra.mxu0 0.0
        %444 = vmatpush.msra.mxu0 0.0
        %445 = vmatpush.msra.mxu0 0.0
        %446 = vmatpush.msra.mxu0 0.0
        %447 = vmatpush.msra.mxu0 0.0
        %448 = vmatpush.msra.mxu0 0.0
        %449 = vmatpush.msra.mxu0 0.0
        %450 = vmatpush.msra.mxu0 0.0
        %451 = vmatpush.msra.mxu0 0.0
        %452 = vmatpush.msra.mxu0 0.0
        %453 = vmatpush.msra.mxu0 0.0
        %454 = vmatpush.msra.mxu0 %v430
        %455 = vmatpush.msra.mxu0 %v429
        %456 = vmatpush.msra.mxu0 %v428
        %457 = vmatpush.msra.mxu0 %v427
        %458 = vmatmul.f32.gmra.mxu0 %v437
        %v459 = vpop.f32.mrf.mxu0
        %v460 = vadd.f32 %v433, %v459
        %461 = vmatmul.f32.gmra.mxu0 %v440
        %v462 = vpop.f32.mrf.mxu0
        %v463 = vadd.f32 %v433, %v462
        %464 = vdwg.mxu0
        %v465 = vmax.f32 %v460, 0.0
        %v466 = vmax.f32 %v463, 0.0
        %v467 = vld [vmem:[%s6] sm:$0xff]
        %v468 = vld [vmem:[%s6 + $0x8] sm:$0xff]
        %v469 = vld [vmem:[%s6 + $0x10] sm:$0xff]
        %v470 = vld [vmem:[%s6 + $0x18] sm:$0xff]
        %v471 = vld [vmem:[%s7] sm:$0x1]
        %v473 = vperm.slane %v471, 0
        %v476 = vsel %vm435, %v465, 0
        %v479 = vsel %vm435, %v466, 0
        %481 = vmatpush.msra.mxu0 0.0
        %482 = vmatpush.msra.mxu0 0.0
        %483 = vmatpush.msra.mxu0 0.0
        %484 = vmatpush.msra.mxu0 0.0
        %485 = vmatpush.msra.mxu0 0.0
        %486 = vmatpush.msra.mxu0 0.0
        %487 = vmatpush.msra.mxu0 0.0
        %488 = vmatpush.msra.mxu0 0.0
        %489 = vmatpush.msra.mxu0 0.0
        %490 = vmatpush.msra.mxu0 0.0
        %491 = vmatpush.msra.mxu0 0.0
        %492 = vmatpush.msra.mxu0 0.0
        %493 = vmatpush.msra.mxu0 %v470
        %494 = vmatpush.msra.mxu0 %v469
        %495 = vmatpush.msra.mxu0 %v468
        %496 = vmatpush.msra.mxu0 %v467
        %497 = vmatmul.f32.gmra.mxu0 %v476
        %v498 = vpop.f32.mrf.mxu0
        %v499 = vadd.f32 %v473, %v498
        %500 = vmatmul.f32.gmra.mxu0 %v479
        %v501 = vpop.f32.mrf.mxu0
        %v502 = vadd.f32 %v473, %v501
        %503 = vdwg.mxu0
        %vm504 = vcmask 31744
        %505 = vst.msk [vmem:[%s335] sm:$0xff] %vm504, %v499
        %506 = vst.msk [vmem:[%s335 + $0x8] sm:$0xff] %vm504, %v502
        %s507 = sand.u32 %s205, 1
        %s508 = sand.u32 %s205, 1
        %s509 = smul.addr %s508, 16
        %s510 = scalar_lea.vmem [#allocation2], %s509
        // Predicated region
        $region53: #{_forward.1} parent=51 // pred_check
          %p511 = pneg %p215
        $region54: #{_forward.1} parent=51 // pred_check_branch
          %513 = sbr.rel (%p511) target = $region56
        $region55: #{_forward.1} parent=51 // pred_region
          %s514 = smul.u32 2, %s19
          %s515 = ssub.s32 3, %s514
          %p516 = scmp.lt.s32.totalorder %s515, 2
          %s517 = scalar_select %p516, %s515, 2
          %s518 = smul.u32 8, %s517
          %p519 = scmp.ne.s32.totalorder 0, %s518
          %s520 = smul.addr %s514, 8
          %s521 = scalar_lea.vmem %s8, %s520
          // Predicated region
          $region57: #{_forward.1} parent=55 // pred_check
            %p522 = pneg %p519
          $region58: #{_forward.1} parent=55 // pred_check_branch
            %524 = sbr.rel (%p522) target = $region60
          $region59: #{_forward.1} parent=55 // pred_region
            // Predicated region
            $region61: #{_forward.1} parent=59 // pred_check
              _
            $region62: #{_forward.1} parent=59 // pred_check_branch
              %526 = sbr.rel (0) target = $region64
            $region63: #{_forward.1} parent=59 // pred_region
              // Predicated region
              $region83: #{_forward.1} parent=63 // pred_check
                _
              $region84: #{_forward.1} parent=63 // pred_check_branch
                %578 = sbr.rel (0) target = $region86
              $region85: #{_forward.1} parent=63 // pred_region
                %s579 = sshrl.u32 %s517, 1
                // While loop
                $region87: #{_forward.1} parent=85 // loop_pre_header
                  _
                $region88: #{_forward.1} parent=85 // loop_header
                  %s581 = sphi 0, %s583
                  %p582 = scmp.ge.s32.totalorder %s581, %s579
                  %s586 = sphi 0, %s595
                  %s587 = sphi %s510, %s598
                  %s588 = sphi %s521, %s599
                $region89: #{_forward.1} parent=85 // loop_header_branch
                  %585 = sbr.rel (%p582) target = $region93
                $region90: #{_forward.1} parent=85 // loop_body
                  %v589 = vld [vmem:[%s587] sm:$0xff]
                  %590 = vst [vmem:[%s588] sm:$0xff] %v589
                  %v591 = vld [vmem:[%s587 + $0x8] sm:$0xff]
                  %592 = vst [vmem:[%s588 + $0x8] sm:$0xff] %v591
                  %s593 = sadd.s32 1, %s586
                  %p594 = scmp.ge.s32.totalorder %s593, %s579
                  %s595 = scalar_select %p594, 0, %s593
                  %s596 = smul.u32 %s595, 16
                  %s597 = smul.u32 %s595, 16
                  %s598 = scalar_lea.vmem %s510, %s596 [#allocation2]
                  %s599 = scalar_lea.vmem %s521, %s597
                $region91: #{_forward.1} parent=85 // loop_footer
                  %s583 = sadd.s32 %s581, 1
                $region92: #{_forward.1} parent=85 // loop_footer_branch
                  %580 = sbr.rel target = $region88
                $region93: #{_forward.1} parent=85 // loop_exit
                  _
                %s600 = sshrl.u32 %s517, 1
                %s601 = sand.u32 %s517, 1
                %s602 = smul.u32 %s600, 2
                %s603 = smul.u32 8, %s602
                %s604 = scalar_lea.vmem %s510, %s603 [#allocation2]
                %s605 = smul.u32 8, %s602
                %s606 = scalar_lea.vmem %s521, %s605
                // While loop
                $region94: #{_forward.1} parent=85 // loop_pre_header
                  _
                $region95: #{_forward.1} parent=85 // loop_header
                  %s608 = sphi 0, %s610
                  %p609 = scmp.ge.s32.totalorder %s608, %s601
                  %s613 = sphi 0, %s620
                  %s614 = sphi %s604, %s623
                  %s615 = sphi %s606, %s624
                $region96: #{_forward.1} parent=85 // loop_header_branch
                  %612 = sbr.rel (%p609) target = $region100
                $region97: #{_forward.1} parent=85 // loop_body
                  %v616 = vld [vmem:[%s614] sm:$0xff]
                  %617 = vst [vmem:[%s615] sm:$0xff] %v616
                  %s618 = sadd.s32 1, %s613
                  %p619 = scmp.ge.s32.totalorder %s618, %s601
                  %s620 = scalar_select %p619, 0, %s618
                  %s621 = smul.u32 %s620, 8
                  %s622 = smul.u32 %s620, 8
                  %s623 = scalar_lea.vmem %s604, %s621 [#allocation2]
                  %s624 = scalar_lea.vmem %s606, %s622
                $region98: #{_forward.1} parent=85 // loop_footer
                  %s610 = sadd.s32 %s608, 1
                $region99: #{_forward.1} parent=85 // loop_footer_branch
                  %607 = sbr.rel target = $region95
                $region100: #{_forward.1} parent=85 // loop_exit
                  _
              $region86: #{_forward.1} parent=63 // pred_fallthru
                _
              // Predicated region
              $region101: #{_forward.1} parent=63 // pred_check
                _
              $region102: #{_forward.1} parent=63 // pred_check_branch
                %626 = sbr.rel target = $region104
              $region103: #{_forward.1} parent=63 // pred_region
                _
              $region104: #{_forward.1} parent=63 // pred_fallthru
                _
            $region64: #{_forward.1} parent=59 // pred_fallthru
              _
            // Predicated region
            $region65: #{_forward.1} parent=59 // pred_check
              _
            $region66: #{_forward.1} parent=59 // pred_check_branch
              %528 = sbr.rel target = $region68
            $region67: #{_forward.1} parent=59 // pred_region
              %s530 = ssub.s32 256, 1
              %s531 = sshrl.u32 %s517, 1
              // While loop
              $region69: #{_forward.1} parent=67 // loop_pre_header
                _
              $region70: #{_forward.1} parent=67 // loop_header
                %s533 = sphi 0, %s535
                %p534 = scmp.ge.s32.totalorder %s533, %s531
                %s538 = sphi 0, %s547
                %s539 = sphi %s510, %s550
                %s540 = sphi %s521, %s551
              $region71: #{_forward.1} parent=67 // loop_header_branch
                %537 = sbr.rel (%p534) target = $region75
              $region72: #{_forward.1} parent=67 // loop_body
                %v541 = vld [vmem:[%s539] sm:%s530]
                %542 = vst [vmem:[%s540] sm:%s530] %v541
                %v543 = vld [vmem:[%s539 + $0x8] sm:%s530]
                %544 = vst [vmem:[%s540 + $0x8] sm:%s530] %v543
                %s545 = sadd.s32 1, %s538
                %p546 = scmp.ge.s32.totalorder %s545, %s531
                %s547 = scalar_select %p546, 0, %s545
                %s548 = smul.u32 %s547, 16
                %s549 = smul.u32 %s547, 16
                %s550 = scalar_lea.vmem %s510, %s548 [#allocation2]
                %s551 = scalar_lea.vmem %s521, %s549
              $region73: #{_forward.1} parent=67 // loop_footer
                %s535 = sadd.s32 %s533, 1
              $region74: #{_forward.1} parent=67 // loop_footer_branch
                %532 = sbr.rel target = $region70
              $region75: #{_forward.1} parent=67 // loop_exit
                _
              %s552 = sshrl.u32 %s517, 1
              %s553 = sand.u32 %s517, 1
              %s554 = smul.u32 %s552, 2
              %s555 = smul.u32 8, %s554
              %s556 = scalar_lea.vmem %s510, %s555 [#allocation2]
              %s557 = smul.u32 8, %s554
              %s558 = scalar_lea.vmem %s521, %s557
              // While loop
              $region76: #{_forward.1} parent=67 // loop_pre_header
                _
              $region77: #{_forward.1} parent=67 // loop_header
                %s560 = sphi 0, %s562
                %p561 = scmp.ge.s32.totalorder %s560, %s553
                %s565 = sphi 0, %s572
                %s566 = sphi %s556, %s575
                %s567 = sphi %s558, %s576
              $region78: #{_forward.1} parent=67 // loop_header_branch
                %564 = sbr.rel (%p561) target = $region82
              $region79: #{_forward.1} parent=67 // loop_body
                %v568 = vld [vmem:[%s566] sm:%s530]
                %569 = vst [vmem:[%s567] sm:%s530] %v568
                %s570 = sadd.s32 1, %s565
                %p571 = scmp.ge.s32.totalorder %s570, %s553
                %s572 = scalar_select %p571, 0, %s570
                %s573 = smul.u32 %s572, 8
                %s574 = smul.u32 %s572, 8
                %s575 = scalar_lea.vmem %s556, %s573 [#allocation2]
                %s576 = scalar_lea.vmem %s558, %s574
              $region80: #{_forward.1} parent=67 // loop_footer
                %s562 = sadd.s32 %s560, 1
              $region81: #{_forward.1} parent=67 // loop_footer_branch
                %559 = sbr.rel target = $region77
              $region82: #{_forward.1} parent=67 // loop_exit
                _
            $region68: #{_forward.1} parent=59 // pred_fallthru
              _
          $region60: #{_forward.1} parent=55 // pred_fallthru
            _
          %627 = vnop
        $region56: #{_forward.1} parent=51 // pred_fallthru
          _
      $region52: #{_forward.1} parent=5 // pred_fallthru
        _
      %p628 = scmp.le.s32.totalorder 2, %s14
      // Predicated region
      $region105: #{_forward.1} parent=5 // pred_check
        %p629 = pneg %p628
      $region106: #{_forward.1} parent=5 // pred_check_branch
        %631 = sbr.rel (%p629) target = $region108
      $region107: #{_forward.1} parent=5 // pred_region
        %s632 = ssub.s32 %s14, 2
        // Predicated region
        $region109: #{_forward.1} parent=107 // pred_check
          %p633 = pneg %p221
        $region110: #{_forward.1} parent=107 // pred_check_branch
          %635 = sbr.rel (%p633) target = $region112
        $region111: #{_forward.1} parent=107 // pred_region
          %s636 = sand.u32 %s206, 1
          %s637 = sand.u32 %s206, 1
          %s638 = smul.addr %s637, 16
          %s639 = scalar_lea.vmem [#allocation2], %s638
        $region112: #{_forward.1} parent=107 // pred_fallthru
          _
      $region108: #{_forward.1} parent=5 // pred_fallthru
        _
    $region6: #{_forward.1} parent=1 // loop_footer
      %s18 = sadd.s32 1, %s14
    $region7: #{_forward.1} parent=1 // loop_footer_branch
      %13 = sbr.rel target = $region3
    $region8: #{_forward.1} parent=1 // loop_exit
      _

// kernel: _forward.1
$region0: #{_forward.1}
  #allocation0 [shape = 'u32[]', space=smem, size = 0x4, offset = 0x4, fixed_abs, tag = 'smem constant byte address 0x4 - core index']
  #allocation1 [shape = 'u32[72,128]{1,0:T(1,128)}', space=vmem, size = 0x9000, scoped, tag = 'internal scratch']
  %s0 = inlined_call_operand.vmem [shape: f32[19,16], index: 0, kind: input, shape index: {}]
  %s1 = inlined_call_operand.vmem [shape: f32[19,6], index: 1, kind: input, shape index: {}]
  %s2 = inlined_call_operand.vmem [shape: f32[22,32], index: 2, kind: input, shape index: {}]
  %s3 = inlined_call_operand.vmem [shape: f32[1,32], index: 3, kind: input, shape index: {}]
  %s4 = inlined_call_operand.vmem [shape: f32[32,32], index: 4, kind: input, shape index: {}]
  %s5 = inlined_call_operand.vmem [shape: f32[1,32], index: 5, kind: input, shape index: {}]
  %s6 = inlined_call_operand.vmem [shape: f32[32,4], index: 6, kind: input, shape index: {}]
  %s7 = inlined_call_operand.vmem [shape: f32[1,4], index: 7, kind: input, shape index: {}]
  %s8 = inlined_call_operand.vmem [shape: f32[19,4], index: 8, kind: output, shape index: {}]
  %s9 = sld [smem:[#allocation0]]
  $region113: #{_forward.1} parent=0
    _
  %s11 = ssub.s32 1, %s9
  %s12 = scalar_select 0, %s11, %s9
  $region1: #{_forward.1} parent=0
    #allocation2 [shape = 'u8[16384]{0}', space=vmem, size = 0x4000, scoped, tag = 'output window, operand 0']
    loop: start=0, step=1, limit=4
    $region2: #{_forward.1} parent=1 // loop_pre_header
      _
    $region3: #{_forward.1} parent=1 // loop_header
      %s14 = sphi 0, %s18
      %p15 = scmp.ge.s32.totalorder %s14, 4
      %s24 = sphi 0, %s26
      %s27 = sphi 0, %s24
      %s28 = sphi 0, %s27
      %s44 = sphi 0, %s28
      %s50 = sphi 0, %s52
      %s53 = sphi 0, %s50
      %s54 = sphi 0, %s53
      %s70 = sphi 0, %s54
      %s74 = sphi 0, %s74
      %s76 = sphi 0, %s74
      %s77 = sphi 0, %s76
      %s91 = sphi 0, %s77
      %s95 = sphi 0, %s95
      %s97 = sphi 0, %s95
      %s98 = sphi 0, %s97
      %s112 = sphi 0, %s98
      %s116 = sphi 0, %s116
      %s118 = sphi 0, %s116
      %s119 = sphi 0, %s118
      %s133 = sphi 0, %s119
      %s137 = sphi 0, %s137
      %s139 = sphi 0, %s137
      %s140 = sphi 0, %s139
      %s154 = sphi 0, %s140
      %s158 = sphi 0, %s158
      %s160 = sphi 0, %s158
      %s161 = sphi 0, %s160
      %s175 = sphi 0, %s161
      %s179 = sphi 0, %s179
      %s181 = sphi 0, %s179
      %s182 = sphi 0, %s181
      %s196 = sphi 0, %s182
      %s202 = sphi 0, %s204
      %s205 = sphi 0, %s202
      %s206 = sphi 0, %s205
      %s222 = sphi 0, %s206
    $region4: #{_forward.1} parent=1 // loop_header_branch
      %17 = sbr.rel (%p15) target = $region8
    $region5: #{_forward.1} parent=1 // loop_body
      %s19 = ssub.s32 %s14, 1
      %s20 = ssub.s32 %s14, 2
      %s21 = sadd.s32 %s14, 1
      %s22 = ssub.s32 %s14, %s21
      %p23 = scmp.eq.s32.totalorder %s22, 0
      %s25 = sadd.s32 %s24, 1
      %s26 = scalar_select %p23, %s24, %s25
      %p29 = pneg %p23
      %p30 = scmp.eq.s32.totalorder %s14, 1
      %p31 = por %p29, %p30
      %p32 = scmp.ne.s32.totalorder %s24, %s27
      %p33 = scmp.eq.s32.totalorder %s14, 0
      %p34 = por %p32, %p33
      %p35 = scmp.ne.s32.totalorder %s24, %s27
      %p36 = scmp.eq.s32.totalorder %s19, 1
      %p37 = por %p35, %p36
      %p38 = scmp.ne.s32.totalorder %s27, %s28
      %p39 = scmp.eq.s32.totalorder %s19, 0
      %p40 = por %p38, %p39
      %p41 = scmp.ne.s32.totalorder %s27, %s28
      %p42 = scmp.eq.s32.totalorder %s20, 1
      %p43 = por %p41, %p42
      %p45 = scmp.ne.s32.totalorder %s28, %s44
      %p46 = scmp.eq.s32.totalorder %s20, 0
      %p47 = por %p45, %p46
      %s48 = ssub.s32 %s14, %s21
      %p49 = scmp.eq.s32.totalorder %s48, 0
      %s51 = sadd.s32 %s50, 1
      %s52 = scalar_select %p49, %s50, %s51
      %p55 = pneg %p49
      %p56 = scmp.eq.s32.totalorder %s14, 1
      %p57 = por %p55, %p56
      %p58 = scmp.ne.s32.totalorder %s50, %s53
      %p59 = scmp.eq.s32.totalorder %s14, 0
      %p60 = por %p58, %p59
      %p61 = scmp.ne.s32.totalorder %s50, %s53
      %p62 = scmp.eq.s32.totalorder %s19, 1
      %p63 = por %p61, %p62
      %p64 = scmp.ne.s32.totalorder %s53, %s54
      %p65 = scmp.eq.s32.totalorder %s19, 0
      %p66 = por %p64, %p65
      %p67 = scmp.ne.s32.totalorder %s53, %s54
      %p68 = scmp.eq.s32.totalorder %s20, 1
      %p69 = por %p67, %p68
      %p71 = scmp.ne.s32.totalorder %s54, %s70
      %p72 = scmp.eq.s32.totalorder %s20, 0
      %p73 = por %p71, %p72
      %s75 = sadd.s32 %s74, 1
      %p78 = scmp.eq.s32.totalorder %s14, 1
      %p79 = scmp.ne.s32.totalorder %s74, %s76
      %p80 = scmp.eq.s32.totalorder %s14, 0
      %p81 = por %p79, %p80
      %p82 = scmp.ne.s32.totalorder %s74, %s76
      %p83 = scmp.eq.s32.totalorder %s19, 1
      %p84 = por %p82, %p83
      %p85 = scmp.ne.s32.totalorder %s76, %s77
      %p86 = scmp.eq.s32.totalorder %s19, 0
      %p87 = por %p85, %p86
      %p88 = scmp.ne.s32.totalorder %s76, %s77
      %p89 = scmp.eq.s32.totalorder %s20, 1
      %p90 = por %p88, %p89
      %p92 = scmp.ne.s32.totalorder %s77, %s91
      %p93 = scmp.eq.s32.totalorder %s20, 0
      %p94 = por %p92, %p93
      %s96 = sadd.s32 %s95, 1
      %p99 = scmp.eq.s32.totalorder %s14, 1
      %p100 = scmp.ne.s32.totalorder %s95, %s97
      %p101 = scmp.eq.s32.totalorder %s14, 0
      %p102 = por %p100, %p101
      %p103 = scmp.ne.s32.totalorder %s95, %s97
      %p104 = scmp.eq.s32.totalorder %s19, 1
      %p105 = por %p103, %p104
      %p106 = scmp.ne.s32.totalorder %s97, %s98
      %p107 = scmp.eq.s32.totalorder %s19, 0
      %p108 = por %p106, %p107
      %p109 = scmp.ne.s32.totalorder %s97, %s98
      %p110 = scmp.eq.s32.totalorder %s20, 1
      %p111 = por %p109, %p110
      %p113 = scmp.ne.s32.totalorder %s98, %s112
      %p114 = scmp.eq.s32.totalorder %s20, 0
      %p115 = por %p113, %p114
      %s117 = sadd.s32 %s116, 1
      %p120 = scmp.eq.s32.totalorder %s14, 1
      %p121 = scmp.ne.s32.totalorder %s116, %s118
      %p122 = scmp.eq.s32.totalorder %s14, 0
      %p123 = por %p121, %p122
      %p124 = scmp.ne.s32.totalorder %s116, %s118
      %p125 = scmp.eq.s32.totalorder %s19, 1
      %p126 = por %p124, %p125
      %p127 = scmp.ne.s32.totalorder %s118, %s119
      %p128 = scmp.eq.s32.totalorder %s19, 0
      %p129 = por %p127, %p128
      %p130 = scmp.ne.s32.totalorder %s118, %s119
      %p131 = scmp.eq.s32.totalorder %s20, 1
      %p132 = por %p130, %p131
      %p134 = scmp.ne.s32.totalorder %s119, %s133
      %p135 = scmp.eq.s32.totalorder %s20, 0
      %p136 = por %p134, %p135
      %s138 = sadd.s32 %s137, 1
      %p141 = scmp.eq.s32.totalorder %s14, 1
      %p142 = scmp.ne.s32.totalorder %s137, %s139
      %p143 = scmp.eq.s32.totalorder %s14, 0
      %p144 = por %p142, %p143
      %p145 = scmp.ne.s32.totalorder %s137, %s139
      %p146 = scmp.eq.s32.totalorder %s19, 1
      %p147 = por %p145, %p146
      %p148 = scmp.ne.s32.totalorder %s139, %s140
      %p149 = scmp.eq.s32.totalorder %s19, 0
      %p150 = por %p148, %p149
      %p151 = scmp.ne.s32.totalorder %s139, %s140
      %p152 = scmp.eq.s32.totalorder %s20, 1
      %p153 = por %p151, %p152
      %p155 = scmp.ne.s32.totalorder %s140, %s154
      %p156 = scmp.eq.s32.totalorder %s20, 0
      %p157 = por %p155, %p156
      %s159 = sadd.s32 %s158, 1
      %p162 = scmp.eq.s32.totalorder %s14, 1
      %p163 = scmp.ne.s32.totalorder %s158, %s160
      %p164 = scmp.eq.s32.totalorder %s14, 0
      %p165 = por %p163, %p164
      %p166 = scmp.ne.s32.totalorder %s158, %s160
      %p167 = scmp.eq.s32.totalorder %s19, 1
      %p168 = por %p166, %p167
      %p169 = scmp.ne.s32.totalorder %s160, %s161
      %p170 = scmp.eq.s32.totalorder %s19, 0
      %p171 = por %p169, %p170
      %p172 = scmp.ne.s32.totalorder %s160, %s161
      %p173 = scmp.eq.s32.totalorder %s20, 1
      %p174 = por %p172, %p173
      %p176 = scmp.ne.s32.totalorder %s161, %s175
      %p177 = scmp.eq.s32.totalorder %s20, 0
      %p178 = por %p176, %p177
      %s180 = sadd.s32 %s179, 1
      %p183 = scmp.eq.s32.totalorder %s14, 1
      %p184 = scmp.ne.s32.totalorder %s179, %s181
      %p185 = scmp.eq.s32.totalorder %s14, 0
      %p186 = por %p184, %p185
      %p187 = scmp.ne.s32.totalorder %s179, %s181
      %p188 = scmp.eq.s32.totalorder %s19, 1
      %p189 = por %p187, %p188
      %p190 = scmp.ne.s32.totalorder %s181, %s182
      %p191 = scmp.eq.s32.totalorder %s19, 0
      %p192 = por %p190, %p191
      %p193 = scmp.ne.s32.totalorder %s181, %s182
      %p194 = scmp.eq.s32.totalorder %s20, 1
      %p195 = por %p193, %p194
      %p197 = scmp.ne.s32.totalorder %s182, %s196
      %p198 = scmp.eq.s32.totalorder %s20, 0
      %p199 = por %p197, %p198
      %s200 = ssub.s32 %s14, %s21
      %p201 = scmp.eq.s32.totalorder %s200, 0
      %s203 = sadd.s32 %s202, 1
      %s204 = scalar_select %p201, %s202, %s203
      %p207 = pneg %p201
      %p208 = scmp.eq.s32.totalorder %s14, 1
      %p209 = por %p207, %p208
      %p210 = scmp.ne.s32.totalorder %s202, %s205
      %p211 = scmp.eq.s32.totalorder %s14, 0
      %p212 = por %p210, %p211
      %p213 = scmp.ne.s32.totalorder %s202, %s205
      %p214 = scmp.eq.s32.totalorder %s19, 1
      %p215 = por %p213, %p214
      %p216 = scmp.ne.s32.totalorder %s205, %s206
      %p217 = scmp.eq.s32.totalorder %s19, 0
      %p218 = por %p216, %p217
      %p219 = scmp.ne.s32.totalorder %s205, %s206
      %p220 = scmp.eq.s32.totalorder %s20, 1
      %p221 = por %p219, %p220
      %p223 = scmp.ne.s32.totalorder %s206, %s222
      %p224 = scmp.eq.s32.totalorder %s20, 0
      %p225 = por %p223, %p224
      %p226 = scmp.le.s32.totalorder 1, %s14
      %p227 = scmp.lt.s32.totalorder %s14, 3
      %p228 = pnand %p226, %p227
      %p229 = pneg %p228
      // Predicated region
      $region9: #{_forward.1} parent=5 // pred_check
        _
      $region10: #{_forward.1} parent=5 // pred_check_branch
        %231 = sbr.rel (%p228) target = $region12
      $region11: #{_forward.1} parent=5 // pred_region
        %s232 = ssub.s32 %s14, 1
        // Predicated region
        $region13: #{_forward.1} parent=11 // pred_check
          %p233 = pneg %p87
        $region14: #{_forward.1} parent=11 // pred_check_branch
          %235 = sbr.rel (%p233) target = $region16
        $region15: #{_forward.1} parent=11 // pred_region
          _
        $region16: #{_forward.1} parent=11 // pred_fallthru
          _
        // Predicated region
        $region17: #{_forward.1} parent=11 // pred_check
          %p236 = pneg %p108
        $region18: #{_forward.1} parent=11 // pred_check_branch
          %238 = sbr.rel (%p236) target = $region20
        $region19: #{_forward.1} parent=11 // pred_region
          _
        $region20: #{_forward.1} parent=11 // pred_fallthru
          _
        // Predicated region
        $region21: #{_forward.1} parent=11 // pred_check
          %p239 = pneg %p129
        $region22: #{_forward.1} parent=11 // pred_check_branch
          %241 = sbr.rel (%p239) target = $region24
        $region23: #{_forward.1} parent=11 // pred_region
          _
        $region24: #{_forward.1} parent=11 // pred_fallthru
          _
        // Predicated region
        $region25: #{_forward.1} parent=11 // pred_check
          %p242 = pneg %p150
        $region26: #{_forward.1} parent=11 // pred_check_branch
          %244 = sbr.rel (%p242) target = $region28
        $region27: #{_forward.1} parent=11 // pred_region
          _
        $region28: #{_forward.1} parent=11 // pred_fallthru
          _
        // Predicated region
        $region29: #{_forward.1} parent=11 // pred_check
          %p245 = pneg %p171
        $region30: #{_forward.1} parent=11 // pred_check_branch
          %247 = sbr.rel (%p245) target = $region32
        $region31: #{_forward.1} parent=11 // pred_region
          _
        $region32: #{_forward.1} parent=11 // pred_fallthru
          _
        // Predicated region
        $region33: #{_forward.1} parent=11 // pred_check
          %p248 = pneg %p192
        $region34: #{_forward.1} parent=11 // pred_check_branch
          %250 = sbr.rel (%p248) target = $region36
        $region35: #{_forward.1} parent=11 // pred_region
          _
        $region36: #{_forward.1} parent=11 // pred_fallthru
          _
      $region12: #{_forward.1} parent=5 // pred_fallthru
        _
      %p251 = scmp.lt.s32.totalorder %s14, 2
      // Predicated region
      $region37: #{_forward.1} parent=5 // pred_check
        %p252 = pneg %p251
      $region38: #{_forward.1} parent=5 // pred_check_branch
        %254 = sbr.rel (%p252) target = $region40
      $region39: #{_forward.1} parent=5 // pred_region
        // Predicated region
        $region41: #{_forward.1} parent=39 // pred_check
          %p255 = pneg %p34
        $region42: #{_forward.1} parent=39 // pred_check_branch
          %257 = sbr.rel (%p255) target = $region44
        $region43: #{_forward.1} parent=39 // pred_region
          %s258 = smul.u32 2, %s14
          %s259 = ssub.s32 3, %s258
          %p260 = scmp.lt.s32.totalorder %s259, 2
          %s261 = scalar_select %p260, %s259, 2
          %s262 = smul.u32 8, %s261
          %p263 = scmp.lt.s32.totalorder %s258, 2
          %s264 = scalar_select %p263, %s258, 2
          %s265 = smul.addr %s264, 8
          %s266 = scalar_lea.vmem %s0, %s265
          %s267 = smul.u32 2, %s14
          %s268 = ssub.s32 3, %s267
          %p269 = scmp.lt.s32.totalorder %s268, 2
          %s270 = scalar_select %p269, %s268, 2
          %s271 = smul.u32 8, %s270
        $region44: #{_forward.1} parent=39 // pred_fallthru
          _
        // Predicated region
        $region45: #{_forward.1} parent=39 // pred_check
          %p272 = pneg %p60
        $region46: #{_forward.1} parent=39 // pred_check_branch
          %274 = sbr.rel (%p272) target = $region48
        $region47: #{_forward.1} parent=39 // pred_region
          %s275 = smul.u32 2, %s14
          %s276 = ssub.s32 3, %s275
          %p277 = scmp.lt.s32.totalorder %s276, 2
          %s278 = scalar_select %p277, %s276, 2
          %s279 = smul.u32 8, %s278
          %p280 = scmp.lt.s32.totalorder %s275, 2
          %s281 = scalar_select %p280, %s275, 2
          %s282 = smul.addr %s281, 8
          %s283 = scalar_lea.vmem %s1, %s282
          %s284 = smul.u32 2, %s14
          %s285 = ssub.s32 3, %s284
          %p286 = scmp.lt.s32.totalorder %s285, 2
          %s287 = scalar_select %p286, %s285, 2
          %s288 = smul.u32 8, %s287
        $region48: #{_forward.1} parent=39 // pred_fallthru
          _
      $region40: #{_forward.1} parent=5 // pred_fallthru
        _
      %p289 = scmp.le.s32.totalorder 1, %s14
      %p290 = scmp.lt.s32.totalorder %s14, 3
      %p291 = pnand %p289, %p290
      %p292 = pneg %p291
      // Predicated region
      $region49: #{_forward.1} parent=5 // pred_check
        _
      $region50: #{_forward.1} parent=5 // pred_check_branch
        %294 = sbr.rel (%p291) target = $region52
      $region51: #{_forward.1} parent=5 // pred_region
        %s295 = ssub.s32 %s14, 1
        %s296 = smul.u32 2, %s19
        %s297 = ssub.s32 3, %s296
        %p298 = scmp.lt.s32.totalorder %s297, 2
        %s299 = scalar_select %p298, %s297, 2
        %s300 = smul.u32 8, %s299
        %p301 = scmp.lt.s32.totalorder %s296, 2
        %s302 = scalar_select %p301, %s296, 2
        %s303 = smul.addr %s302, 8
        %s304 = scalar_lea.vmem %s0, %s303
        %p305 = pneg %p40
        %p306 = pneg %p37
        %s307 = smul.u32 2, %s19
        %s308 = ssub.s32 3, %s307
        %p309 = scmp.lt.s32.totalorder %s308, 2
        %s310 = scalar_select %p309, %s308, 2
        %s311 = smul.u32 8, %s310
        %p312 = scmp.lt.s32.totalorder %s307, 2
        %s313 = scalar_select %p312, %s307, 2
        %s314 = smul.addr %s313, 8
        %s315 = scalar_lea.vmem %s1, %s314
        %p316 = pneg %p66
        %p317 = pneg %p63
        %p318 = pneg %p87
        %p319 = pneg %p84
        %p320 = pneg %p108
        %p321 = pneg %p105
        %p322 = pneg %p129
        %p323 = pneg %p126
        %p324 = pneg %p150
        %p325 = pneg %p147
        %p326 = pneg %p171
        %p327 = pneg %p168
        %p328 = pneg %p192
        %p329 = pneg %p189
        %p330 = pneg %p218
        %p331 = pneg %p215
        %s332 = sand.u32 %s205, 1
        %s333 = sand.u32 %s205, 1
        %s334 = smul.addr %s333, 16
        %s335 = scalar_lea.vmem [#allocation2], %s334
        %s336 = smul.u32 2, %s19
        %s337 = ssub.s32 3, %s336
        %p338 = scmp.lt.s32.totalorder %s337, 2
        %s339 = scalar_select %p338, %s337, 2
        %s340 = smul.u32 8, %s339
        %p341 = scmp.lt.s32.totalorder %s336, 2
        %s342 = scalar_select %p341, %s336, 2
        %s343 = smul.addr %s342, 8
        %s344 = scalar_lea.vmem %s0, %s343
        %s345 = smul.u32 2, %s19
        %s346 = ssub.s32 3, %s345
        %p347 = scmp.lt.s32.totalorder %s346, 2
        %s348 = scalar_select %p347, %s346, 2
        %s349 = smul.u32 8, %s348
        %s350 = smul.u32 2, %s19
        %s351 = ssub.s32 3, %s350
        %p352 = scmp.lt.s32.totalorder %s351, 2
        %s353 = scalar_select %p352, %s351, 2
        %s354 = smul.u32 8, %s353
        %p355 = scmp.lt.s32.totalorder %s350, 2
        %s356 = scalar_select %p355, %s350, 2
        %s357 = smul.addr %s356, 8
        %s358 = scalar_lea.vmem %s1, %s357
        %s359 = smul.u32 2, %s19
        %s360 = ssub.s32 3, %s359
        %p361 = scmp.lt.s32.totalorder %s360, 2
        %s362 = scalar_select %p361, %s360, 2
        %s363 = smul.u32 8, %s362
        %s364 = smul.u32 2, %s19
        %s365 = ssub.s32 3, %s364
        %p366 = scmp.lt.s32.totalorder %s365, 2
        %s367 = scalar_select %p366, %s365, 2
        %s368 = smul.u32 8, %s367
        %v369 = vld [vmem:[%s344] sm:$0xff]
        %v370 = vld [vmem:[%s344 + $0x8] sm:$0xff]
        %v371 = vld [vmem:[%s2] sm:$0xff]
        %v372 = vld [vmem:[%s2 + $0x8] sm:$0xff]
        %v373 = vld [vmem:[%s358] sm:$0xff]
        %v374 = vld [vmem:[%s358 + $0x8] sm:$0xff]
        %v375 = vld [vmem:[%s2 + $0x10] sm:$0x3f]
        %vm376 = vcmask 48128
        %v378 = vsel %vm376, %v373, 0
        %v381 = vsel %vm376, %v374, 0
        %vm383 = vcmask 1045504
        %v385 = vsel %vm383, %v375, 0
        %387 = vmatpush.msra.mxu0 0.0
        %388 = vmatpush.msra.mxu0 0.0
        %389 = vmatpush.msra.mxu0 0.0
        %390 = vmatpush.msra.mxu0 0.0
        %391 = vmatpush.msra.mxu0 0.0
        %392 = vmatpush.msra.mxu0 0.0
        %393 = vmatpush.msra.mxu0 0.0
        %394 = vmatpush.msra.mxu0 0.0
        %395 = vmatpush.msra.mxu0 0.0
        %396 = vmatpush.msra.mxu0 0.0
        %397 = vmatpush.msra.mxu0 0.0
        %398 = vmatpush.msra.mxu0 0.0
        %399 = vmatpush.msra.mxu0 0.0
        %400 = vmatpush.msra.mxu0 0.0
        %401 = vmatpush.msra.mxu0 0.0
        %402 = vmatpush.msra.mxu0 %v385
        %403 = vmatmul.f32.gmra.mxu0 %v378
        %v404 = vpop.f32.mrf.mxu0
        %v405 = vadd.f32 0.0, %v404
        %406 = vmatmul.f32.gmra.mxu0 %v381
        %v407 = vpop.f32.mrf.mxu0
        %v408 = vadd.f32 0.0, %v407
        %409 = vdwg.mxu0
        %vm410 = vcmask 130048
        %v412 = vsel %vm410, %v369, 0
        %v415 = vsel %vm410, %v370, 0
        %417 = vmatpush.msra.mxu0 0.0
        %418 = vmatpush.msra.mxu0 0.0
        %419 = vmatpush.msra.mxu0 0.0
        %420 = vmatpush.msra.mxu0 0.0
        %421 = vmatpush.msra.mxu0 0.0
        %422 = vmatpush.msra.mxu0 0.0
        %423 = vmatpush.msra.mxu0 0.0
        %424 = vmatpush.msra.mxu0 0.0
        %425 = vmatpush.msra.mxu0 0.0
        %426 = vmatpush.msra.mxu0 0.0
        %427 = vmatpush.msra.mxu0 0.0
        %428 = vmatpush.msra.mxu0 0.0
        %429 = vmatpush.msra.mxu0 0.0
        %430 = vmatpush.msra.mxu0 0.0
        %431 = vmatpush.msra.mxu0 %v372
        %432 = vmatpush.msra.mxu0 %v371
        %433 = vmatmul.f32.gmra.mxu0 %v412
        %v434 = vpop.f32.mrf.mxu0
        %v435 = vadd.f32 %v405, %v434
        %436 = vmatmul.f32.gmra.mxu0 %v415
        %v437 = vpop.f32.mrf.mxu0
        %v438 = vadd.f32 %v408, %v437
        %439 = vdwg.mxu0
        %v440 = vld [vmem:[%s3] sm:$0x1]
        %v442 = vperm.slane %v440, 0
        %v444 = vadd.f32 %v435, %v442
        %v445 = vadd.f32 %v438, %v442
        %v446 = vmax.f32 %v444, 0.0
        %v447 = vmax.f32 %v445, 0.0
        %v448 = vld [vmem:[%s4] sm:$0xff]
        %v449 = vld [vmem:[%s4 + $0x8] sm:$0xff]
        %v450 = vld [vmem:[%s4 + $0x10] sm:$0xff]
        %v451 = vld [vmem:[%s4 + $0x18] sm:$0xff]
        %v452 = vld [vmem:[%s5] sm:$0x1]
        %v454 = vperm.slane %v452, 0
        %vm456 = vcmask 261120
        %v458 = vsel %vm456, %v446, 0
        %v461 = vsel %vm456, %v447, 0
        %463 = vmatpush.msra.mxu0 0.0
        %464 = vmatpush.msra.mxu0 0.0
        %465 = vmatpush.msra.mxu0 0.0
        %466 = vmatpush.msra.mxu0 0.0
        %467 = vmatpush.msra.mxu0 0.0
        %468 = vmatpush.msra.mxu0 0.0
        %469 = vmatpush.msra.mxu0 0.0
        %470 = vmatpush.msra.mxu0 0.0
        %471 = vmatpush.msra.mxu0 0.0
        %472 = vmatpush.msra.mxu0 0.0
        %473 = vmatpush.msra.mxu0 0.0
        %474 = vmatpush.msra.mxu0 0.0
        %475 = vmatpush.msra.mxu0 %v451
        %476 = vmatpush.msra.mxu0 %v450
        %477 = vmatpush.msra.mxu0 %v449
        %478 = vmatpush.msra.mxu0 %v448
        %479 = vmatmul.f32.gmra.mxu0 %v458
        %v480 = vpop.f32.mrf.mxu0
        %v481 = vadd.f32 %v454, %v480
        %482 = vmatmul.f32.gmra.mxu0 %v461
        %v483 = vpop.f32.mrf.mxu0
        %v484 = vadd.f32 %v454, %v483
        %485 = vdwg.mxu0
        %v486 = vmax.f32 %v481, 0.0
        %v487 = vmax.f32 %v484, 0.0
        %v488 = vld [vmem:[%s6] sm:$0xff]
        %v489 = vld [vmem:[%s6 + $0x8] sm:$0xff]
        %v490 = vld [vmem:[%s6 + $0x10] sm:$0xff]
        %v491 = vld [vmem:[%s6 + $0x18] sm:$0xff]
        %v492 = vld [vmem:[%s7] sm:$0x1]
        %v494 = vperm.slane %v492, 0
        %v497 = vsel %vm456, %v486, 0
        %v500 = vsel %vm456, %v487, 0
        %502 = vmatpush.msra.mxu0 0.0
        %503 = vmatpush.msra.mxu0 0.0
        %504 = vmatpush.msra.mxu0 0.0
        %505 = vmatpush.msra.mxu0 0.0
        %506 = vmatpush.msra.mxu0 0.0
        %507 = vmatpush.msra.mxu0 0.0
        %508 = vmatpush.msra.mxu0 0.0
        %509 = vmatpush.msra.mxu0 0.0
        %510 = vmatpush.msra.mxu0 0.0
        %511 = vmatpush.msra.mxu0 0.0
        %512 = vmatpush.msra.mxu0 0.0
        %513 = vmatpush.msra.mxu0 0.0
        %514 = vmatpush.msra.mxu0 %v491
        %515 = vmatpush.msra.mxu0 %v490
        %516 = vmatpush.msra.mxu0 %v489
        %517 = vmatpush.msra.mxu0 %v488
        %518 = vmatmul.f32.gmra.mxu0 %v497
        %v519 = vpop.f32.mrf.mxu0
        %v520 = vadd.f32 %v494, %v519
        %521 = vmatmul.f32.gmra.mxu0 %v500
        %v522 = vpop.f32.mrf.mxu0
        %v523 = vadd.f32 %v494, %v522
        %524 = vdwg.mxu0
        %vm525 = vcmask 31744
        %526 = vst.msk [vmem:[%s335] sm:$0xff] %vm525, %v520
        %527 = vst.msk [vmem:[%s335 + $0x8] sm:$0xff] %vm525, %v523
        %s528 = sand.u32 %s205, 1
        %s529 = sand.u32 %s205, 1
        %s530 = smul.addr %s529, 16
        %s531 = scalar_lea.vmem [#allocation2], %s530
        // Predicated region
        $region53: #{_forward.1} parent=51 // pred_check
          %p532 = pneg %p215
        $region54: #{_forward.1} parent=51 // pred_check_branch
          %534 = sbr.rel (%p532) target = $region56
        $region55: #{_forward.1} parent=51 // pred_region
          %s535 = smul.u32 2, %s19
          %s536 = ssub.s32 3, %s535
          %p537 = scmp.lt.s32.totalorder %s536, 2
          %s538 = scalar_select %p537, %s536, 2
          %s539 = smul.u32 8, %s538
          %p540 = scmp.ne.s32.totalorder 0, %s539
          %s541 = smul.addr %s535, 8
          %s542 = scalar_lea.vmem %s8, %s541
          // Predicated region
          $region57: #{_forward.1} parent=55 // pred_check
            %p543 = pneg %p540
          $region58: #{_forward.1} parent=55 // pred_check_branch
            %545 = sbr.rel (%p543) target = $region60
          $region59: #{_forward.1} parent=55 // pred_region
            // Predicated region
            $region61: #{_forward.1} parent=59 // pred_check
              _
            $region62: #{_forward.1} parent=59 // pred_check_branch
              %547 = sbr.rel (0) target = $region64
            $region63: #{_forward.1} parent=59 // pred_region
              // Predicated region
              $region83: #{_forward.1} parent=63 // pred_check
                _
              $region84: #{_forward.1} parent=63 // pred_check_branch
                %599 = sbr.rel (0) target = $region86
              $region85: #{_forward.1} parent=63 // pred_region
                %s600 = sshrl.u32 %s538, 1
                // While loop
                $region87: #{_forward.1} parent=85 // loop_pre_header
                  _
                $region88: #{_forward.1} parent=85 // loop_header
                  %s602 = sphi 0, %s604
                  %p603 = scmp.ge.s32.totalorder %s602, %s600
                  %s607 = sphi 0, %s616
                  %s608 = sphi %s531, %s619
                  %s609 = sphi %s542, %s620
                $region89: #{_forward.1} parent=85 // loop_header_branch
                  %606 = sbr.rel (%p603) target = $region93
                $region90: #{_forward.1} parent=85 // loop_body
                  %v610 = vld [vmem:[%s608] sm:$0xff]
                  %611 = vst [vmem:[%s609] sm:$0xff] %v610
                  %v612 = vld [vmem:[%s608 + $0x8] sm:$0xff]
                  %613 = vst [vmem:[%s609 + $0x8] sm:$0xff] %v612
                  %s614 = sadd.s32 1, %s607
                  %p615 = scmp.ge.s32.totalorder %s614, %s600
                  %s616 = scalar_select %p615, 0, %s614
                  %s617 = smul.u32 %s616, 16
                  %s618 = smul.u32 %s616, 16
                  %s619 = scalar_lea.vmem %s531, %s617 [#allocation2]
                  %s620 = scalar_lea.vmem %s542, %s618
                $region91: #{_forward.1} parent=85 // loop_footer
                  %s604 = sadd.s32 %s602, 1
                $region92: #{_forward.1} parent=85 // loop_footer_branch
                  %601 = sbr.rel target = $region88
                $region93: #{_forward.1} parent=85 // loop_exit
                  _
                %s621 = sshrl.u32 %s538, 1
                %s622 = sand.u32 %s538, 1
                %s623 = smul.u32 %s621, 2
                %s624 = smul.u32 8, %s623
                %s625 = scalar_lea.vmem %s531, %s624 [#allocation2]
                %s626 = smul.u32 8, %s623
                %s627 = scalar_lea.vmem %s542, %s626
                // While loop
                $region94: #{_forward.1} parent=85 // loop_pre_header
                  _
                $region95: #{_forward.1} parent=85 // loop_header
                  %s629 = sphi 0, %s631
                  %p630 = scmp.ge.s32.totalorder %s629, %s622
                  %s634 = sphi 0, %s641
                  %s635 = sphi %s625, %s644
                  %s636 = sphi %s627, %s645
                $region96: #{_forward.1} parent=85 // loop_header_branch
                  %633 = sbr.rel (%p630) target = $region100
                $region97: #{_forward.1} parent=85 // loop_body
                  %v637 = vld [vmem:[%s635] sm:$0xff]
                  %638 = vst [vmem:[%s636] sm:$0xff] %v637
                  %s639 = sadd.s32 1, %s634
                  %p640 = scmp.ge.s32.totalorder %s639, %s622
                  %s641 = scalar_select %p640, 0, %s639
                  %s642 = smul.u32 %s641, 8
                  %s643 = smul.u32 %s641, 8
                  %s644 = scalar_lea.vmem %s625, %s642 [#allocation2]
                  %s645 = scalar_lea.vmem %s627, %s643
                $region98: #{_forward.1} parent=85 // loop_footer
                  %s631 = sadd.s32 %s629, 1
                $region99: #{_forward.1} parent=85 // loop_footer_branch
                  %628 = sbr.rel target = $region95
                $region100: #{_forward.1} parent=85 // loop_exit
                  _
              $region86: #{_forward.1} parent=63 // pred_fallthru
                _
              // Predicated region
              $region101: #{_forward.1} parent=63 // pred_check
                _
              $region102: #{_forward.1} parent=63 // pred_check_branch
                %647 = sbr.rel target = $region104
              $region103: #{_forward.1} parent=63 // pred_region
                _
              $region104: #{_forward.1} parent=63 // pred_fallthru
                _
            $region64: #{_forward.1} parent=59 // pred_fallthru
              _
            // Predicated region
            $region65: #{_forward.1} parent=59 // pred_check
              _
            $region66: #{_forward.1} parent=59 // pred_check_branch
              %549 = sbr.rel target = $region68
            $region67: #{_forward.1} parent=59 // pred_region
              %s551 = ssub.s32 256, 1
              %s552 = sshrl.u32 %s538, 1
              // While loop
              $region69: #{_forward.1} parent=67 // loop_pre_header
                _
              $region70: #{_forward.1} parent=67 // loop_header
                %s554 = sphi 0, %s556
                %p555 = scmp.ge.s32.totalorder %s554, %s552
                %s559 = sphi 0, %s568
                %s560 = sphi %s531, %s571
                %s561 = sphi %s542, %s572
              $region71: #{_forward.1} parent=67 // loop_header_branch
                %558 = sbr.rel (%p555) target = $region75
              $region72: #{_forward.1} parent=67 // loop_body
                %v562 = vld [vmem:[%s560] sm:%s551]
                %563 = vst [vmem:[%s561] sm:%s551] %v562
                %v564 = vld [vmem:[%s560 + $0x8] sm:%s551]
                %565 = vst [vmem:[%s561 + $0x8] sm:%s551] %v564
                %s566 = sadd.s32 1, %s559
                %p567 = scmp.ge.s32.totalorder %s566, %s552
                %s568 = scalar_select %p567, 0, %s566
                %s569 = smul.u32 %s568, 16
                %s570 = smul.u32 %s568, 16
                %s571 = scalar_lea.vmem %s531, %s569 [#allocation2]
                %s572 = scalar_lea.vmem %s542, %s570
              $region73: #{_forward.1} parent=67 // loop_footer
                %s556 = sadd.s32 %s554, 1
              $region74: #{_forward.1} parent=67 // loop_footer_branch
                %553 = sbr.rel target = $region70
              $region75: #{_forward.1} parent=67 // loop_exit
                _
              %s573 = sshrl.u32 %s538, 1
              %s574 = sand.u32 %s538, 1
              %s575 = smul.u32 %s573, 2
              %s576 = smul.u32 8, %s575
              %s577 = scalar_lea.vmem %s531, %s576 [#allocation2]
              %s578 = smul.u32 8, %s575
              %s579 = scalar_lea.vmem %s542, %s578
              // While loop
              $region76: #{_forward.1} parent=67 // loop_pre_header
                _
              $region77: #{_forward.1} parent=67 // loop_header
                %s581 = sphi 0, %s583
                %p582 = scmp.ge.s32.totalorder %s581, %s574
                %s586 = sphi 0, %s593
                %s587 = sphi %s577, %s596
                %s588 = sphi %s579, %s597
              $region78: #{_forward.1} parent=67 // loop_header_branch
                %585 = sbr.rel (%p582) target = $region82
              $region79: #{_forward.1} parent=67 // loop_body
                %v589 = vld [vmem:[%s587] sm:%s551]
                %590 = vst [vmem:[%s588] sm:%s551] %v589
                %s591 = sadd.s32 1, %s586
                %p592 = scmp.ge.s32.totalorder %s591, %s574
                %s593 = scalar_select %p592, 0, %s591
                %s594 = smul.u32 %s593, 8
                %s595 = smul.u32 %s593, 8
                %s596 = scalar_lea.vmem %s577, %s594 [#allocation2]
                %s597 = scalar_lea.vmem %s579, %s595
              $region80: #{_forward.1} parent=67 // loop_footer
                %s583 = sadd.s32 %s581, 1
              $region81: #{_forward.1} parent=67 // loop_footer_branch
                %580 = sbr.rel target = $region77
              $region82: #{_forward.1} parent=67 // loop_exit
                _
            $region68: #{_forward.1} parent=59 // pred_fallthru
              _
          $region60: #{_forward.1} parent=55 // pred_fallthru
            _
          %648 = vnop
        $region56: #{_forward.1} parent=51 // pred_fallthru
          _
      $region52: #{_forward.1} parent=5 // pred_fallthru
        _
      %p649 = scmp.le.s32.totalorder 2, %s14
      // Predicated region
      $region105: #{_forward.1} parent=5 // pred_check
        %p650 = pneg %p649
      $region106: #{_forward.1} parent=5 // pred_check_branch
        %652 = sbr.rel (%p650) target = $region108
      $region107: #{_forward.1} parent=5 // pred_region
        %s653 = ssub.s32 %s14, 2
        // Predicated region
        $region109: #{_forward.1} parent=107 // pred_check
          %p654 = pneg %p221
        $region110: #{_forward.1} parent=107 // pred_check_branch
          %656 = sbr.rel (%p654) target = $region112
        $region111: #{_forward.1} parent=107 // pred_region
          %s657 = sand.u32 %s206, 1
          %s658 = sand.u32 %s206, 1
          %s659 = smul.addr %s658, 16
          %s660 = scalar_lea.vmem [#allocation2], %s659
        $region112: #{_forward.1} parent=107 // pred_fallthru
          _
      $region108: #{_forward.1} parent=5 // pred_fallthru
        _
    $region6: #{_forward.1} parent=1 // loop_footer
      %s18 = sadd.s32 1, %s14
    $region7: #{_forward.1} parent=1 // loop_footer_branch
      %13 = sbr.rel target = $region3
    $region8: #{_forward.1} parent=1 // loop_exit
      _

</llo_original>
